<compile_context>
chip_gen: v6e
topology: v6e:2x2x1
jax: 0.10.0
libtpu: 0.0.40
codegen_flags: <defaults>
</compile_context>

<pallas_src>
import functools

import jax
import jax.numpy as jnp
from jax.experimental import pallas as pl
from jax.experimental.pallas import tpu as pltpu


def _round_up(x, m):
    return (x + m - 1) // m * m


def _pick_row_tile(ho, cap=8):
    best = 1
    for d in range(1, min(ho, cap) + 1):
        if ho % d == 0:
            best = d
    return best


# ----------------------------------------------------------------------------
# Fused kernel: expand + BN + ReLU6 + depthwise + BN + ReLU6 + project + BN
#               + residual, for one (batch, row-tile) grid step.
# ----------------------------------------------------------------------------
def _fused_kernel(x_hbm, w1_ref, b1_ref, wd_ref, b2_ref, w3_ref, b3_ref, *rest,
                  s, dil, TR, H, W, Wo, rows_in, res_mode):
    if res_mode == "conv":
        wr_ref, br_ref, o_ref, xwin, sem = rest
    else:
        wr_ref = br_ref = None
        o_ref, xwin, sem = rest

    n = pl.program_id(0)
    r = pl.program_id(1)
    g0 = r * (TR * s)                       # first padded input row of window

    # Manual DMA of the halo'd input row window (overlapping windows cannot be
    # expressed with a blocked BlockSpec).  Single-buffered: compute per tile
    # dominates at real channel widths.
    cp = pltpu.make_async_copy(x_hbm.at[n, pl.ds(g0, rows_in)], xwin, sem)
    cp.start()
    cp.wait()

    xw = xwin[...]                          # (rows_in, Wp, Cp) f32
    _, Wp, Cp = xw.shape
    Hd = w1_ref.shape[1]
    Co = w3_ref.shape[1]

    # ---- 1x1 expand + BN + ReLU6 (BN scale pre-folded into w1) --------------
    h = jnp.dot(xw.reshape(rows_in * Wp, Cp).astype(jnp.bfloat16), w1_ref[...],
                preferred_element_type=jnp.float32)
    h = jnp.clip(h + b1_ref[...], 0.0, 6.0).reshape(rows_in, Wp, Hd)

    # Zero the depthwise zero-padding ring: expanding a zero-padded pixel gives
    # relu6(bias) != 0, but the PyTorch depthwise conv pads the *hidden* with 0.
    shape3 = (rows_in, Wp, Hd)
    row_ids = g0 + jax.lax.broadcasted_iota(jnp.int32, shape3, 0)
    col_ids = jax.lax.broadcasted_iota(jnp.int32, shape3, 1)
    valid = ((row_ids >= dil) & (row_ids < dil + H) &
             (col_ids >= dil) & (col_ids < dil + W))
    h = jnp.where(valid, h, 0.0)

    # ---- 3x3 depthwise (stride s, dilation dil) + BN + ReLU6 ----------------
    wd = wd_ref[...]                        # (9, Hd), BN scale folded
    acc = jnp.zeros((TR, Wo, Hd), jnp.float32)
    for kh in range(3):
        for kw in range(3):
            if s == 1:
                tap = h[kh * dil:kh * dil + TR, kw * dil:kw * dil + Wo, :]
            else:
                tap = jax.lax.slice(
                    h, (kh * dil, kw * dil, 0),
                    (kh * dil + (TR - 1) * s + 1,
                     kw * dil + (Wo - 1) * s + 1, Hd),
                    (s, s, 1))
            acc = acc + tap * wd[kh * 3 + kw]
    d = jnp.clip(acc + b2_ref[...], 0.0, 6.0)

    # ---- 1x1 project + BN + residual ----------------------------------------
    y = jnp.dot(d.reshape(TR * Wo, Hd).astype(jnp.bfloat16), w3_ref[...],
                preferred_element_type=jnp.float32)
    y = y + b3_ref[...]
    if res_mode != "none":                  # only reachable when s == 1 -> Wo == W
        xr = xw[dil:dil + TR, dil:dil + W, :].reshape(TR * W, Cp)
        if res_mode == "identity":          # Cp == Co in this mode
            y = y + xr
        else:                               # "conv": 1x1 res_conv + BN
            y = y + jnp.dot(xr.astype(jnp.bfloat16), wr_ref[...],
                            preferred_element_type=jnp.float32) + br_ref[...]

    o_ref[0] = y.reshape(TR, Wo, Co).astype(o_ref.dtype)


# ----------------------------------------------------------------------------
# Wrapper: full InvertedResidual forward (NCHW in / NCHW out)
# ----------------------------------------------------------------------------
def inverted_residual_forward(x_nchw, prep, *, s=1, dilation=1):
    N, Cin, H, W = x_nchw.shape
    dil = dilation
    Cp, Hd, Co = prep["Cp"], prep["Hd"], prep["Co"]
    Cout = prep["Cout"]

    Ho = (H - 1) // s + 1
    Wo = (W - 1) // s + 1
    TR = _pick_row_tile(Ho, cap=8)          # small tile -> vreg-resident acc
    R = Ho // TR
    rows_in = (TR - 1) * s + 2 * dil + 1    # halo'd input rows per tile
    Wp = _round_up(W + 2 * dil, 8)          # sublane-aligned padded width

    if s == 1:
        res_mode = "identity" if Cin == Cout else "conv"
    else:
        res_mode = "none"

    # NHWC, zero-pad spatially (for the depthwise) and channels (lane padding).
    x = jnp.transpose(x_nchw, (0, 2, 3, 1)).astype(jnp.float32)
    x_pad = jnp.pad(x, ((0, 0), (dil, dil),
                        (dil, Wp - W - dil), (0, Cp - Cin)))

    kernel = functools.partial(
        _fused_kernel, s=s, dil=dil, TR=TR, H=H, W=W, Wo=Wo,
        rows_in=rows_in, res_mode=res_mode)

    in_specs = [
        pl.BlockSpec(memory_space=pl.ANY),              # x_pad stays in HBM
        pl.BlockSpec((Cp, Hd), lambda n, r: (0, 0)),    # w1 (scale folded, bf16)
        pl.BlockSpec((1, Hd), lambda n, r: (0, 0)),     # b1
        pl.BlockSpec((9, Hd), lambda n, r: (0, 0)),     # depthwise weights
        pl.BlockSpec((1, Hd), lambda n, r: (0, 0)),     # b2
        pl.BlockSpec((Hd, Co), lambda n, r: (0, 0)),    # w3
        pl.BlockSpec((1, Co), lambda n, r: (0, 0)),     # b3
    ]
    args = [x_pad, prep["w1"], prep["b1"], prep["wdw"], prep["b2"],
            prep["w3"], prep["b3"]]
    if res_mode == "conv":                  # no dummy residual operands otherwise
        in_specs += [pl.BlockSpec((Cp, Co), lambda n, r: (0, 0)),
                     pl.BlockSpec((1, Co), lambda n, r: (0, 0))]
        args += [prep["wr"], prep["br"]]

    out = pl.pallas_call(
        kernel,
        out_shape=jax.ShapeDtypeStruct((N, Ho, Wo, Co), jnp.float32),
        grid_spec=pltpu.PrefetchScalarGridSpec(
            num_scalar_prefetch=0,
            grid=(N, R),
            in_specs=in_specs,
            out_specs=pl.BlockSpec((1, TR, Wo, Co), lambda n, r: (n, r, 0, 0)),
            scratch_shapes=[pltpu.VMEM((rows_in, Wp, Cp), jnp.float32),
                            pltpu.SemaphoreType.DMA(())],
        ),
        compiler_params=pltpu.CompilerParams(
            dimension_semantics=("parallel", "parallel"),
            vmem_limit_bytes=32 * 1024 * 1024),
    )(*args)

    # Strip channel lane padding and return NCHW (module convention).
    return jnp.transpose(out[..., :Cout], (0, 3, 1, 2))


# ----------------------------------------------------------------------------
# Parameter init (PyTorch layouts) + BN folding + kernel-ready preparation
# ----------------------------------------------------------------------------
def _fold_bn(gamma, beta, mean, var, eps=1e-5):
    scale = gamma / jnp.sqrt(var + eps)
    bias = beta - mean * scale
    return scale, bias


def init_params(key, cin, cout, t):
    hid = cin * t
    k1, k2, k3, k4 = jax.random.split(key, 4)
    # PyTorch conv weight layouts: [out, in, kh, kw]
    w1 = jax.random.normal(k1, (hid, cin), jnp.float32) * 0.2      # [hid, cin, 1, 1]
    wdw = jax.random.normal(k2, (hid, 3, 3), jnp.float32) * 0.2    # [hid, 1, 3, 3]
    w3 = jax.random.normal(k3, (cout, hid), jnp.float32) * 0.2     # [cout, hid, 1, 1]
    wr = jax.random.normal(k4, (cout, cin), jnp.float32) * 0.2     # [cout, cin, 1, 1]

    def bn(c, base):
        idx = jnp.arange(c, dtype=jnp.float32)
        gamma = 1.0 + 0.1 * jnp.cos(idx + base)
        beta = 0.05 * jnp.sin(idx + base)
        mean = 0.02 * idx - 0.01 * c
        var = 1.0 + 0.05 * idx / max(c, 1)
        return _fold_bn(gamma, beta, mean, var)

    s1, b1 = bn(hid, 0.0)
    s2, b2 = bn(hid, 1.0)
    s3, b3 = bn(cout, 2.0)
    sr, br = bn(cout, 3.0)

    return {
        "w1": jnp.transpose(w1),                                   # (cin, hid)
        "wdw": jnp.transpose(wdw, (1, 2, 0)).reshape(9, hid),      # (9, hid), kh*3+kw
        "w3": jnp.transpose(w3),                                   # (hid, cout)
        "wr": jnp.transpose(wr),                                   # (cin, cout)
        "s1": s1, "b1": b1, "s2": s2, "b2": b2,
        "s3": s3, "b3": b3, "sr": sr, "br": br,
    }


def prepare_params(params, cin, cout, t):
    """Fold BN scale into conv weights, pad channels to 128 lanes, cast the
    matmul weights to bf16 (f32 accumulation happens on the MXU)."""
    hid = cin * t
    Cp = _round_up(cin, 128)
    Hd = _round_up(hid, 128)
    Co = _round_up(cout, 128)

    def pad2(a, r, c):
        return jnp.pad(a, ((0, r - a.shape[0]), (0, c - a.shape[1])))

    w1 = pad2(params["w1"] * params["s1"][None, :], Cp, Hd).astype(jnp.bfloat16)
    b1 = jnp.pad(params["b1"], (0, Hd - hid)).reshape(1, Hd)
    wdw = jnp.pad(params["wdw"] * params["s2"][None, :], ((0, 0), (0, Hd - hid)))
    b2 = jnp.pad(params["b2"], (0, Hd - hid)).reshape(1, Hd)
    w3 = pad2(params["w3"] * params["s3"][None, :], Hd, Co).astype(jnp.bfloat16)
    b3 = jnp.pad(params["b3"], (0, Co - cout)).reshape(1, Co)
    wr = pad2(params["wr"] * params["sr"][None, :], Cp, Co).astype(jnp.bfloat16)
    br = jnp.pad(params["br"], (0, Co - cout)).reshape(1, Co)

    return dict(w1=w1, b1=b1, wdw=wdw, b2=b2, w3=w3, b3=b3, wr=wr, br=br,
                Cin=cin, Cout=cout, hid=hid, Cp=Cp, Hd=Hd, Co=Co)


# ----------------------------------------------------------------------------
# Pure-JAX reference (same folded params / matmul precision; correctness only)
# ----------------------------------------------------------------------------
def reference_forward(x_nchw, prep, *, s=1, dilation=1):
    N, Cin, H, W = x_nchw.shape
    dil = dilation
    Cp, Hd, Cout = prep["Cp"], prep["Hd"], prep["Cout"]
    x = jnp.transpose(x_nchw, (0, 2, 3, 1)).astype(jnp.float32)
    x = jnp.pad(x, ((0, 0), (0, 0), (0, 0), (0, Cp - Cin)))

    h = jnp.einsum("nhwc,cd->nhwd", x.astype(jnp.bfloat16), prep["w1"],
                   preferred_element_type=jnp.float32)
    h = jnp.clip(h + prep["b1"], 0.0, 6.0)

    hp = jnp.pad(h, ((0, 0), (dil, dil), (dil, dil), (0, 0)))
    Ho = (H - 1) // s + 1
    Wo = (W - 1) // s + 1
    acc = jnp.zeros((N, Ho, Wo, Hd), jnp.float32)
    for kh in range(3):
        for kw in range(3):
            tap = jax.lax.slice(
                hp, (0, kh * dil, kw * dil, 0),
                (N, kh * dil + (Ho - 1) * s + 1,
                 kw * dil + (Wo - 1) * s + 1, Hd),
                (1, s, s, 1))
            acc = acc + tap * prep["wdw"][kh * 3 + kw]
    d = jnp.clip(acc + prep["b2"], 0.0, 6.0)

    y = jnp.einsum("nhwc,cd->nhwd", d.astype(jnp.bfloat16), prep["w3"],
                   preferred_element_type=jnp.float32) + prep["b3"]
    if s == 1:
        if Cin == Cout:
            y = y + x
        else:
            y = y + jnp.einsum("nhwc,cd->nhwd", x.astype(jnp.bfloat16),
                               prep["wr"],
                               preferred_element_type=jnp.float32) + prep["br"]
    return jnp.transpose(y[..., :Cout], (0, 3, 1, 2))


if __name__ == "__main__":
    N, Cin, H, W = 2, 4, 16, 16
    Cout, t, s, dil = 8, 6, 1, 1      # in != out and s == 1 -> exercises res_conv

    key = jax.random.PRNGKey(0)
    kx, kp = jax.random.split(key)
    x = jax.random.normal(kx, (N, Cin, H, W), jnp.float32)
    raw = init_params(kp, Cin, Cout, t)
    prep = prepare_params(raw, Cin, Cout, t)

    out = inverted_residual_forward(x, prep, s=s, dilation=dil)
    out = jax.block_until_ready(out)

    ref = reference_forward(x, prep, s=s, dilation=dil)
    assert out.shape == (N, Cout, H, W), out.shape
    max_err = float(jnp.max(jnp.abs(out - ref)))
    assert jnp.allclose(out, ref, atol=2e-3, rtol=2e-3), max_err

    print("KERNEL_OK")
</pallas_src>

<mosaic_0001>
module attributes {stable_mosaic.version = 11 : i64} {
  func.func @_fused_kernel(%arg0: i32, %arg1: i32, %arg2: memref<2x18x24x128xf32, #tpu.memory_space<any>>, %arg3: memref<128x128xbf16, #tpu.memory_space<vmem>>, %arg4: memref<1x128xf32, #tpu.memory_space<vmem>>, %arg5: memref<9x128xf32, #tpu.memory_space<vmem>>, %arg6: memref<1x128xf32, #tpu.memory_space<vmem>>, %arg7: memref<128x128xbf16, #tpu.memory_space<vmem>>, %arg8: memref<1x128xf32, #tpu.memory_space<vmem>>, %arg9: memref<128x128xbf16, #tpu.memory_space<vmem>>, %arg10: memref<1x128xf32, #tpu.memory_space<vmem>>, %arg11: memref<1x8x16x128xf32, #tpu.memory_space<vmem>>, %arg12: memref<10x24x128xf32, #tpu.memory_space<vmem>>, %arg13: memref<!tpu.dma_semaphore, #tpu.memory_space<semaphore_mem>>) attributes {dimension_semantics = [#tpu.dimension_semantics<parallel>, #tpu.dimension_semantics<parallel>], iteration_bounds = array<i64: 2, 2>, scalar_prefetch = 0 : i64, scratch_operands = 2 : i64, tpu.core_type = #tpu.core_type<tc>, window_params = [{}, {pipeline_mode = #tpu.pipeline_mode<synchronous>, transform_indices = @transform_1, window_bounds = array<i64: 128, 128>}, {pipeline_mode = #tpu.pipeline_mode<synchronous>, transform_indices = @transform_2, window_bounds = array<i64: 1, 128>}, {pipeline_mode = #tpu.pipeline_mode<synchronous>, transform_indices = @transform_3, window_bounds = array<i64: 9, 128>}, {pipeline_mode = #tpu.pipeline_mode<synchronous>, transform_indices = @transform_4, window_bounds = array<i64: 1, 128>}, {pipeline_mode = #tpu.pipeline_mode<synchronous>, transform_indices = @transform_5, window_bounds = array<i64: 128, 128>}, {pipeline_mode = #tpu.pipeline_mode<synchronous>, transform_indices = @transform_6, window_bounds = array<i64: 1, 128>}, {pipeline_mode = #tpu.pipeline_mode<synchronous>, transform_indices = @transform_7, window_bounds = array<i64: 128, 128>}, {pipeline_mode = #tpu.pipeline_mode<synchronous>, transform_indices = @transform_8, window_bounds = array<i64: 1, 128>}, {transform_indices = @transform_9, window_bounds = array<i64: 1, 8, 16, 128>}]} {
    %c8_i32 = arith.constant 8 : i32
    %0 = arith.muli %arg1, %c8_i32 : i32
    %c0_i32 = arith.constant 0 : i32
    %c0_i32_0 = arith.constant 0 : i32
    %1 = tpu.memref_slice %arg2[%arg0, %0, %c0_i32, %c0_i32_0] : memref<2x18x24x128xf32, #tpu.memory_space<any>> -> memref<1x10x24x128xf32, #tpu.memory_space<any>>
    %2 = tpu.memref_squeeze %1 : memref<1x10x24x128xf32, #tpu.memory_space<any>> -> memref<10x24x128xf32, #tpu.memory_space<any>>
    tpu.enqueue_dma source(%2 : memref<10x24x128xf32, #tpu.memory_space<any>>) target(%arg12 : memref<10x24x128xf32, #tpu.memory_space<vmem>>) target_semaphore(%arg13 : memref<!tpu.dma_semaphore, #tpu.memory_space<semaphore_mem>>)
    %c0_i32_1 = arith.constant 0 : i32
    %c0_i32_2 = arith.constant 0 : i32
    %3 = tpu.memref_slice %arg2[%arg0, %0, %c0_i32_1, %c0_i32_2] : memref<2x18x24x128xf32, #tpu.memory_space<any>> -> memref<1x10x24x128xf32, #tpu.memory_space<any>>
    %4 = tpu.memref_squeeze %3 : memref<1x10x24x128xf32, #tpu.memory_space<any>> -> memref<10x24x128xf32, #tpu.memory_space<any>>
    tpu.wait_dma2 semaphore(%arg13 : memref<!tpu.dma_semaphore, #tpu.memory_space<semaphore_mem>>) src(%4 : memref<10x24x128xf32, #tpu.memory_space<any>>) dst(%arg12 : memref<10x24x128xf32, #tpu.memory_space<vmem>>)
    %c0 = arith.constant 0 : index
    %c0_3 = arith.constant 0 : index
    %c0_4 = arith.constant 0 : index
    %5 = vector.load %arg12[%c0, %c0_3, %c0_4] : memref<10x24x128xf32, #tpu.memory_space<vmem>>, vector<10x24x128xf32>
    %6 = vector.shape_cast %5 : vector<10x24x128xf32> to vector<240x128xf32>
    %7 = arith.truncf %6 : vector<240x128xf32> to vector<240x128xbf16>
    %c0_5 = arith.constant 0 : index
    %c0_6 = arith.constant 0 : index
    %8 = vector.load %arg3[%c0_5, %c0_6] : memref<128x128xbf16, #tpu.memory_space<vmem>>, vector<128x128xbf16>
    %cst = arith.constant dense<0.000000e+00> : vector<240x128xf32>
    %9 = tpu.matmul %7, %8, %cst {dimension_numbers = #tpu.dot_dimension_numbers<[1], [0], [0], [1], [0, 0, 1, 1], [], []>} : vector<240x128xbf16>, vector<128x128xbf16>, vector<240x128xf32> -> vector<240x128xf32>
    %c0_7 = arith.constant 0 : index
    %c0_8 = arith.constant 0 : index
    %10 = vector.load %arg4[%c0_7, %c0_8] : memref<1x128xf32, #tpu.memory_space<vmem>>, vector<1x128xf32>
    %11 = vector.broadcast %10 : vector<1x128xf32> to vector<240x128xf32>
    %12 = arith.addf %9, %11 : vector<240x128xf32>
    %cst_9 = arith.constant 0.000000e+00 : f32
    %cst_10 = arith.constant 6.000000e+00 : f32
    %13 = vector.broadcast %cst_9 : f32 to vector<240x128xf32>
    %14 = arith.maximumf %13, %12 : vector<240x128xf32>
    %15 = vector.broadcast %cst_10 : f32 to vector<240x128xf32>
    %16 = arith.minimumf %15, %14 : vector<240x128xf32>
    %17 = vector.shape_cast %16 : vector<240x128xf32> to vector<10x24x128xf32>
    %18 = tpu.iota {dimensions = array<i32: 0>} : vector<10x24x128xi32>
    %19 = vector.broadcast %0 : i32 to vector<10x24x128xi32>
    %20 = arith.addi %19, %18 : vector<10x24x128xi32>
    %21 = tpu.iota {dimensions = array<i32: 1>} : vector<10x24x128xi32>
    %c1_i32 = arith.constant 1 : i32
    %22 = vector.broadcast %c1_i32 : i32 to vector<10x24x128xi32>
    %23 = arith.cmpi sge, %20, %22 : vector<10x24x128xi32>
    %c17_i32 = arith.constant 17 : i32
    %24 = vector.broadcast %c17_i32 : i32 to vector<10x24x128xi32>
    %25 = arith.cmpi slt, %20, %24 : vector<10x24x128xi32>
    %26 = arith.andi %23, %25 : vector<10x24x128xi1>
    %c1_i32_11 = arith.constant 1 : i32
    %27 = vector.broadcast %c1_i32_11 : i32 to vector<10x24x128xi32>
    %28 = arith.cmpi sge, %21, %27 : vector<10x24x128xi32>
    %29 = arith.andi %26, %28 : vector<10x24x128xi1>
    %c17_i32_12 = arith.constant 17 : i32
    %30 = vector.broadcast %c17_i32_12 : i32 to vector<10x24x128xi32>
    %31 = arith.cmpi slt, %21, %30 : vector<10x24x128xi32>
    %32 = arith.andi %29, %31 : vector<10x24x128xi1>
    %cst_13 = arith.constant 0.000000e+00 : f32
    %33 = vector.broadcast %cst_13 : f32 to vector<10x24x128xf32>
    %34 = arith.select %32, %17, %33 : vector<10x24x128xi1>, vector<10x24x128xf32>
    %c0_14 = arith.constant 0 : index
    %c0_15 = arith.constant 0 : index
    %35 = vector.load %arg5[%c0_14, %c0_15] : memref<9x128xf32, #tpu.memory_space<vmem>>, vector<9x128xf32>
    %cst_16 = arith.constant 0.000000e+00 : f32
    %36 = vector.broadcast %cst_16 : f32 to vector<8x16x128xf32>
    %37 = vector.extract_strided_slice %34 {offsets = [0, 0, 0], sizes = [8, 16, 128], strides = [1, 1, 1]} : vector<10x24x128xf32> to vector<8x16x128xf32>
    %38 = vector.extract_strided_slice %35 {offsets = [0, 0], sizes = [1, 128], strides = [1, 1]} : vector<9x128xf32> to vector<1x128xf32>
    %39 = vector.shape_cast %38 : vector<1x128xf32> to vector<128xf32>
    %40 = vector.shape_cast %39 : vector<128xf32> to vector<1x1x128xf32>
    %41 = vector.broadcast %40 : vector<1x1x128xf32> to vector<8x16x128xf32>
    %42 = arith.mulf %37, %41 : vector<8x16x128xf32>
    %43 = arith.addf %36, %42 : vector<8x16x128xf32>
    %44 = vector.extract_strided_slice %34 {offsets = [0, 1, 0], sizes = [8, 16, 128], strides = [1, 1, 1]} : vector<10x24x128xf32> to vector<8x16x128xf32>
    %45 = vector.extract_strided_slice %35 {offsets = [1, 0], sizes = [1, 128], strides = [1, 1]} : vector<9x128xf32> to vector<1x128xf32>
    %46 = vector.shape_cast %45 : vector<1x128xf32> to vector<128xf32>
    %47 = vector.shape_cast %46 : vector<128xf32> to vector<1x1x128xf32>
    %48 = vector.broadcast %47 : vector<1x1x128xf32> to vector<8x16x128xf32>
    %49 = arith.mulf %44, %48 : vector<8x16x128xf32>
    %50 = arith.addf %43, %49 : vector<8x16x128xf32>
    %51 = vector.extract_strided_slice %34 {offsets = [0, 2, 0], sizes = [8, 16, 128], strides = [1, 1, 1]} : vector<10x24x128xf32> to vector<8x16x128xf32>
    %52 = vector.extract_strided_slice %35 {offsets = [2, 0], sizes = [1, 128], strides = [1, 1]} : vector<9x128xf32> to vector<1x128xf32>
    %53 = vector.shape_cast %52 : vector<1x128xf32> to vector<128xf32>
    %54 = vector.shape_cast %53 : vector<128xf32> to vector<1x1x128xf32>
    %55 = vector.broadcast %54 : vector<1x1x128xf32> to vector<8x16x128xf32>
    %56 = arith.mulf %51, %55 : vector<8x16x128xf32>
    %57 = arith.addf %50, %56 : vector<8x16x128xf32>
    %58 = vector.extract_strided_slice %34 {offsets = [1, 0, 0], sizes = [8, 16, 128], strides = [1, 1, 1]} : vector<10x24x128xf32> to vector<8x16x128xf32>
    %59 = vector.extract_strided_slice %35 {offsets = [3, 0], sizes = [1, 128], strides = [1, 1]} : vector<9x128xf32> to vector<1x128xf32>
    %60 = vector.shape_cast %59 : vector<1x128xf32> to vector<128xf32>
    %61 = vector.shape_cast %60 : vector<128xf32> to vector<1x1x128xf32>
    %62 = vector.broadcast %61 : vector<1x1x128xf32> to vector<8x16x128xf32>
    %63 = arith.mulf %58, %62 : vector<8x16x128xf32>
    %64 = arith.addf %57, %63 : vector<8x16x128xf32>
    %65 = vector.extract_strided_slice %34 {offsets = [1, 1, 0], sizes = [8, 16, 128], strides = [1, 1, 1]} : vector<10x24x128xf32> to vector<8x16x128xf32>
    %66 = vector.extract_strided_slice %35 {offsets = [4, 0], sizes = [1, 128], strides = [1, 1]} : vector<9x128xf32> to vector<1x128xf32>
    %67 = vector.shape_cast %66 : vector<1x128xf32> to vector<128xf32>
    %68 = vector.shape_cast %67 : vector<128xf32> to vector<1x1x128xf32>
    %69 = vector.broadcast %68 : vector<1x1x128xf32> to vector<8x16x128xf32>
    %70 = arith.mulf %65, %69 : vector<8x16x128xf32>
    %71 = arith.addf %64, %70 : vector<8x16x128xf32>
    %72 = vector.extract_strided_slice %34 {offsets = [1, 2, 0], sizes = [8, 16, 128], strides = [1, 1, 1]} : vector<10x24x128xf32> to vector<8x16x128xf32>
    %73 = vector.extract_strided_slice %35 {offsets = [5, 0], sizes = [1, 128], strides = [1, 1]} : vector<9x128xf32> to vector<1x128xf32>
    %74 = vector.shape_cast %73 : vector<1x128xf32> to vector<128xf32>
    %75 = vector.shape_cast %74 : vector<128xf32> to vector<1x1x128xf32>
    %76 = vector.broadcast %75 : vector<1x1x128xf32> to vector<8x16x128xf32>
    %77 = arith.mulf %72, %76 : vector<8x16x128xf32>
    %78 = arith.addf %71, %77 : vector<8x16x128xf32>
    %79 = vector.extract_strided_slice %34 {offsets = [2, 0, 0], sizes = [8, 16, 128], strides = [1, 1, 1]} : vector<10x24x128xf32> to vector<8x16x128xf32>
    %80 = vector.extract_strided_slice %35 {offsets = [6, 0], sizes = [1, 128], strides = [1, 1]} : vector<9x128xf32> to vector<1x128xf32>
    %81 = vector.shape_cast %80 : vector<1x128xf32> to vector<128xf32>
    %82 = vector.shape_cast %81 : vector<128xf32> to vector<1x1x128xf32>
    %83 = vector.broadcast %82 : vector<1x1x128xf32> to vector<8x16x128xf32>
    %84 = arith.mulf %79, %83 : vector<8x16x128xf32>
    %85 = arith.addf %78, %84 : vector<8x16x128xf32>
    %86 = vector.extract_strided_slice %34 {offsets = [2, 1, 0], sizes = [8, 16, 128], strides = [1, 1, 1]} : vector<10x24x128xf32> to vector<8x16x128xf32>
    %87 = vector.extract_strided_slice %35 {offsets = [7, 0], sizes = [1, 128], strides = [1, 1]} : vector<9x128xf32> to vector<1x128xf32>
    %88 = vector.shape_cast %87 : vector<1x128xf32> to vector<128xf32>
    %89 = vector.shape_cast %88 : vector<128xf32> to vector<1x1x128xf32>
    %90 = vector.broadcast %89 : vector<1x1x128xf32> to vector<8x16x128xf32>
    %91 = arith.mulf %86, %90 : vector<8x16x128xf32>
    %92 = arith.addf %85, %91 : vector<8x16x128xf32>
    %93 = vector.extract_strided_slice %34 {offsets = [2, 2, 0], sizes = [8, 16, 128], strides = [1, 1, 1]} : vector<10x24x128xf32> to vector<8x16x128xf32>
    %94 = vector.extract_strided_slice %35 {offsets = [8, 0], sizes = [1, 128], strides = [1, 1]} : vector<9x128xf32> to vector<1x128xf32>
    %95 = vector.shape_cast %94 : vector<1x128xf32> to vector<128xf32>
    %96 = vector.shape_cast %95 : vector<128xf32> to vector<1x1x128xf32>
    %97 = vector.broadcast %96 : vector<1x1x128xf32> to vector<8x16x128xf32>
    %98 = arith.mulf %93, %97 : vector<8x16x128xf32>
    %99 = arith.addf %92, %98 : vector<8x16x128xf32>
    %c0_17 = arith.constant 0 : index
    %c0_18 = arith.constant 0 : index
    %100 = vector.load %arg6[%c0_17, %c0_18] : memref<1x128xf32, #tpu.memory_space<vmem>>, vector<1x128xf32>
    %101 = vector.shape_cast %100 : vector<1x128xf32> to vector<1x1x128xf32>
    %102 = vector.broadcast %101 : vector<1x1x128xf32> to vector<8x16x128xf32>
    %103 = arith.addf %99, %102 : vector<8x16x128xf32>
    %cst_19 = arith.constant 0.000000e+00 : f32
    %cst_20 = arith.constant 6.000000e+00 : f32
    %104 = vector.broadcast %cst_19 : f32 to vector<8x16x128xf32>
    %105 = arith.maximumf %104, %103 : vector<8x16x128xf32>
    %106 = vector.broadcast %cst_20 : f32 to vector<8x16x128xf32>
    %107 = arith.minimumf %106, %105 : vector<8x16x128xf32>
    %108 = vector.shape_cast %107 : vector<8x16x128xf32> to vector<128x128xf32>
    %109 = arith.truncf %108 : vector<128x128xf32> to vector<128x128xbf16>
    %c0_21 = arith.constant 0 : index
    %c0_22 = arith.constant 0 : index
    %110 = vector.load %arg7[%c0_21, %c0_22] : memref<128x128xbf16, #tpu.memory_space<vmem>>, vector<128x128xbf16>
    %cst_23 = arith.constant dense<0.000000e+00> : vector<128x128xf32>
    %111 = tpu.matmul %109, %110, %cst_23 {dimension_numbers = #tpu.dot_dimension_numbers<[1], [0], [0], [1], [0, 0, 1, 1], [], []>} : vector<128x128xbf16>, vector<128x128xbf16>, vector<128x128xf32> -> vector<128x128xf32>
    %c0_24 = arith.constant 0 : index
    %c0_25 = arith.constant 0 : index
    %112 = vector.load %arg8[%c0_24, %c0_25] : memref<1x128xf32, #tpu.memory_space<vmem>>, vector<1x128xf32>
    %113 = vector.broadcast %112 : vector<1x128xf32> to vector<128x128xf32>
    %114 = arith.addf %111, %113 : vector<128x128xf32>
    %115 = vector.extract_strided_slice %5 {offsets = [1, 1, 0], sizes = [8, 16, 128], strides = [1, 1, 1]} : vector<10x24x128xf32> to vector<8x16x128xf32>
    %116 = vector.shape_cast %115 : vector<8x16x128xf32> to vector<128x128xf32>
    %117 = arith.truncf %116 : vector<128x128xf32> to vector<128x128xbf16>
    %c0_26 = arith.constant 0 : index
    %c0_27 = arith.constant 0 : index
    %118 = vector.load %arg9[%c0_26, %c0_27] : memref<128x128xbf16, #tpu.memory_space<vmem>>, vector<128x128xbf16>
    %cst_28 = arith.constant dense<0.000000e+00> : vector<128x128xf32>
    %119 = tpu.matmul %117, %118, %cst_28 {dimension_numbers = #tpu.dot_dimension_numbers<[1], [0], [0], [1], [0, 0, 1, 1], [], []>} : vector<128x128xbf16>, vector<128x128xbf16>, vector<128x128xf32> -> vector<128x128xf32>
    %120 = arith.addf %114, %119 : vector<128x128xf32>
    %c0_29 = arith.constant 0 : index
    %c0_30 = arith.constant 0 : index
    %121 = vector.load %arg10[%c0_29, %c0_30] : memref<1x128xf32, #tpu.memory_space<vmem>>, vector<1x128xf32>
    %122 = vector.broadcast %121 : vector<1x128xf32> to vector<128x128xf32>
    %123 = arith.addf %120, %122 : vector<128x128xf32>
    %124 = vector.shape_cast %123 : vector<128x128xf32> to vector<8x16x128xf32>
    %c0_31 = arith.constant 0 : index
    %c0_32 = arith.constant 0 : index
    %c0_33 = arith.constant 0 : index
    %c0_34 = arith.constant 0 : index
    %125 = vector.load %arg11[%c0_31, %c0_32, %c0_33, %c0_34] : memref<1x8x16x128xf32, #tpu.memory_space<vmem>>, vector<1x8x16x128xf32>
    %126 = vector.shape_cast %125 : vector<1x8x16x128xf32> to vector<8x16x128xf32>
    %127 = vector.shape_cast %124 : vector<8x16x128xf32> to vector<1x8x16x128xf32>
    tpu.vector_store %arg11[%c0_31, %c0_32, %c0_33, %c0_34], %127 {strides = array<i32>} : memref<1x8x16x128xf32, #tpu.memory_space<vmem>>, vector<1x8x16x128xf32>,
    return
  }
  func.func @transform_1(%arg0: i32, %arg1: i32) -> (i32, i32) {
    %c0_i32 = arith.constant 0 : i32
    %c0_i32_0 = arith.constant 0 : i32
    %c0_i32_1 = arith.constant 0 : i32
    return %c0_i32, %c0_i32_0 : i32, i32
  }
  func.func @transform_2(%arg0: i32, %arg1: i32) -> (i32, i32) {
    %c0_i32 = arith.constant 0 : i32
    %c0_i32_0 = arith.constant 0 : i32
    %c0_i32_1 = arith.constant 0 : i32
    return %c0_i32, %c0_i32_0 : i32, i32
  }
  func.func @transform_3(%arg0: i32, %arg1: i32) -> (i32, i32) {
    %c0_i32 = arith.constant 0 : i32
    %c0_i32_0 = arith.constant 0 : i32
    %c0_i32_1 = arith.constant 0 : i32
    return %c0_i32, %c0_i32_0 : i32, i32
  }
  func.func @transform_4(%arg0: i32, %arg1: i32) -> (i32, i32) {
    %c0_i32 = arith.constant 0 : i32
    %c0_i32_0 = arith.constant 0 : i32
    %c0_i32_1 = arith.constant 0 : i32
    return %c0_i32, %c0_i32_0 : i32, i32
  }
  func.func @transform_5(%arg0: i32, %arg1: i32) -> (i32, i32) {
    %c0_i32 = arith.constant 0 : i32
    %c0_i32_0 = arith.constant 0 : i32
    %c0_i32_1 = arith.constant 0 : i32
    return %c0_i32, %c0_i32_0 : i32, i32
  }
  func.func @transform_6(%arg0: i32, %arg1: i32) -> (i32, i32) {
    %c0_i32 = arith.constant 0 : i32
    %c0_i32_0 = arith.constant 0 : i32
    %c0_i32_1 = arith.constant 0 : i32
    return %c0_i32, %c0_i32_0 : i32, i32
  }
  func.func @transform_7(%arg0: i32, %arg1: i32) -> (i32, i32) {
    %c0_i32 = arith.constant 0 : i32
    %c0_i32_0 = arith.constant 0 : i32
    %c0_i32_1 = arith.constant 0 : i32
    return %c0_i32, %c0_i32_0 : i32, i32
  }
  func.func @transform_8(%arg0: i32, %arg1: i32) -> (i32, i32) {
    %c0_i32 = arith.constant 0 : i32
    %c0_i32_0 = arith.constant 0 : i32
    %c0_i32_1 = arith.constant 0 : i32
    return %c0_i32, %c0_i32_0 : i32, i32
  }
  func.func @transform_9(%arg0: i32, %arg1: i32) -> (i32, i32, i32, i32) {
    %c0_i32 = arith.constant 0 : i32
    %c0_i32_0 = arith.constant 0 : i32
    %c0_i32_1 = arith.constant 0 : i32
    return %arg0, %arg1, %c0_i32, %c0_i32_0 : i32, i32, i32, i32
  }
}

</mosaic_0001>

<llo_original>
// kernel: tpu_custom_call.1
$region0: #{tpu_custom_call.1}
  #allocation0 [shape = 'u32[]', space=smem, size = 0x4, offset = 0x4, fixed_abs, tag = 'smem constant byte address 0x4 - core index']
  #allocation1 [shape = 'u32[144,128]{1,0:T(1,128)}', space=vmem, size = 0x12000, scoped, tag = 'internal scratch']
  #allocation2 [shape = 'f32[10,24,128]{2,1,0:T(8,128)}', space=vmem, size = 0x1e000, scoped, tag = 'scratch operand']
  #allocation3 [shape = 's32[1]{0}', space=sflag, size = 0x4, scoped, tag = 'scratch operand']
  #allocation13 [shape = 's32[]', space=sflag, size = 0x4, offset = 0, fixed_abs, tag = 'sflag constant byte address 0x0 - dummy sync flag']
  #allocation14 [shape = 's32[]', space=sflag, size = 0x4, offset = 0, fixed_abs, tag = 'sflag constant byte address 0x0 - dummy sync flag']
  #allocation15 [shape = 'u32[]', space=smem, size = 0x4, offset = 0x44, fixed_abs, tag = 'smem constant byte address 0x44 - assertion arg 0']
  #allocation16 [shape = 'u32[]', space=smem, size = 0x4, offset = 0x48, fixed_abs, tag = 'smem constant byte address 0x48 - assertion arg 1']
  %s0 = inlined_call_operand.hbm [shape: f32[2,18,24,128], index: 0, kind: input, shape index: {}]
  %s1 = inlined_call_operand.hbm [shape: bf16[128,128], index: 1, kind: input, shape index: {}]
  %s2 = inlined_call_operand.vmem [shape: f32[1,128], index: 2, kind: input, shape index: {}]
  %s3 = inlined_call_operand.hbm [shape: f32[9,128], index: 3, kind: input, shape index: {}]
  %s4 = inlined_call_operand.vmem [shape: f32[1,128], index: 4, kind: input, shape index: {}]
  %s5 = inlined_call_operand.hbm [shape: bf16[128,128], index: 5, kind: input, shape index: {}]
  %s6 = inlined_call_operand.vmem [shape: f32[1,128], index: 6, kind: input, shape index: {}]
  %s7 = inlined_call_operand.hbm [shape: bf16[128,128], index: 7, kind: input, shape index: {}]
  %s8 = inlined_call_operand.vmem [shape: f32[1,128], index: 8, kind: input, shape index: {}]
  %s9 = inlined_call_operand.hbm [shape: f32[2,16,16,128], index: 9, kind: output, shape index: {}]
  %s10 = sld [smem:[#allocation0]]
  $region85: #{tpu_custom_call.1} parent=0
    _
  %s12 = ssub.s32 1, %s10
  %s13 = scalar_select 0, %s12, %s10
  $region1: #{tpu_custom_call.1} parent=0
    #allocation4 [shape = 'u8[32768]{0}', space=vmem, size = 0x8000, scoped, tag = 'input window, operand 1, single buffered']
    #allocation5 [shape = 's32[2]{0}', space=sflag, size = 0x8, scoped, tag = 'scoped memory for tpu_custom_call.1']
    #allocation6 [shape = 's32[2]{0}', space=sflag, size = 0x8, scoped, tag = 'scoped memory for tpu_custom_call.1']
    #allocation7 [shape = 'u8[8192]{0}', space=vmem, size = 0x2000, scoped, tag = 'input window, operand 3, single buffered']
    #allocation8 [shape = 's32[1]{0}', space=sflag, size = 0x4, scoped, tag = 'scoped memory for tpu_custom_call.1']
    #allocation9 [shape = 'u8[32768]{0}', space=vmem, size = 0x8000, scoped, tag = 'input window, operand 5, single buffered']
    #allocation10 [shape = 'u8[32768]{0}', space=vmem, size = 0x8000, scoped, tag = 'input window, operand 7, single buffered']
    #allocation11 [shape = 's32[1]{0}', space=sflag, size = 0x4, scoped, tag = 'scoped memory for tpu_custom_call.1']
    #allocation12 [shape = 'u8[131072]{0}', space=vmem, size = 0x20000, scoped, tag = 'output window, operand 0']
    %14 = vsyncpa [#allocation5], 0
    %15 = vsyncpa [#allocation8], 0
    %16 = vsyncpa [#allocation11], 0
    %17 = vsyncpa [#allocation6], 0
    %s18 = scalar_lea.sflag [#allocation6], 1
    %19 = vsyncpa %s18, 0
    loop: start=0, step=1, limit=6
    $region2: #{tpu_custom_call.1} parent=1 // loop_pre_header
      _
    $region3: #{tpu_custom_call.1} parent=1 // loop_header
      %s21 = sphi 0, %s25
      %p22 = scmp.ge.s32.totalorder %s21, 6
      %s28 = sphi 0, %s40
      %s29 = sphi 0, %s36
      %s30 = sphi 0, %s28
      %s31 = sphi 0, %s29
      %s32 = sphi 0, %s30
      %s33 = sphi 0, %s31
      %s41 = sphi 0, %s41
      %s43 = sphi 0, %s41
      %s44 = sphi 0, %s43
      %s58 = sphi 0, %s44
      %s62 = sphi 0, %s62
      %s64 = sphi 0, %s62
      %s65 = sphi 0, %s64
      %s79 = sphi 0, %s65
      %s83 = sphi 0, %s83
      %s85 = sphi 0, %s83
      %s86 = sphi 0, %s85
      %s100 = sphi 0, %s86
      %s104 = sphi 0, %s104
      %s106 = sphi 0, %s104
      %s107 = sphi 0, %s106
      %s121 = sphi 0, %s107
      %s125 = sphi 0, %s125
      %s127 = sphi 0, %s125
      %s128 = sphi 0, %s127
      %s142 = sphi 0, %s128
      %s146 = sphi 0, %s146
      %s148 = sphi 0, %s146
      %s149 = sphi 0, %s148
      %s163 = sphi 0, %s149
      %s167 = sphi 0, %s167
      %s169 = sphi 0, %s167
      %s170 = sphi 0, %s169
      %s184 = sphi 0, %s170
      %s188 = sphi 0, %s188
      %s190 = sphi 0, %s188
      %s191 = sphi 0, %s190
      %s205 = sphi 0, %s191
      %s213 = sphi 0, %s215
      %s216 = sphi 0, %s213
      %s217 = sphi 0, %s216
      %s233 = sphi 0, %s217
    $region4: #{tpu_custom_call.1} parent=1 // loop_header_branch
      %24 = sbr.rel (%p22) target = $region8
    $region5: #{tpu_custom_call.1} parent=1 // loop_body
      %s26 = ssub.s32 %s21, 1
      %s27 = ssub.s32 %s21, 2
      %s34 = sadd.s32 1, %s29
      %p35 = scmp.ge.s32.totalorder %s34, 2
      %s36 = scalar_select %p35, 0, %s34
      %s37 = sadd.s32 1, %s28
      %s38 = scalar_select %p35, %s37, %s28
      %p39 = scmp.ge.s32.totalorder %s38, 2
      %s40 = scalar_select %p39, 0, %s38
      %s42 = sadd.s32 %s41, 1
      %p45 = scmp.eq.s32.totalorder %s21, 3
      %p46 = scmp.ne.s32.totalorder %s41, %s43
      %p47 = scmp.eq.s32.totalorder %s21, 0
      %p48 = por %p46, %p47
      %p49 = scmp.ne.s32.totalorder %s41, %s43
      %p50 = scmp.eq.s32.totalorder %s26, 3
      %p51 = por %p49, %p50
      %p52 = scmp.ne.s32.totalorder %s43, %s44
      %p53 = scmp.eq.s32.totalorder %s26, 0
      %p54 = por %p52, %p53
      %p55 = scmp.ne.s32.totalorder %s43, %s44
      %p56 = scmp.eq.s32.totalorder %s27, 3
      %p57 = por %p55, %p56
      %p59 = scmp.ne.s32.totalorder %s44, %s58
      %p60 = scmp.eq.s32.totalorder %s27, 0
      %p61 = por %p59, %p60
      %s63 = sadd.s32 %s62, 1
      %p66 = scmp.eq.s32.totalorder %s21, 3
      %p67 = scmp.ne.s32.totalorder %s62, %s64
      %p68 = scmp.eq.s32.totalorder %s21, 0
      %p69 = por %p67, %p68
      %p70 = scmp.ne.s32.totalorder %s62, %s64
      %p71 = scmp.eq.s32.totalorder %s26, 3
      %p72 = por %p70, %p71
      %p73 = scmp.ne.s32.totalorder %s64, %s65
      %p74 = scmp.eq.s32.totalorder %s26, 0
      %p75 = por %p73, %p74
      %p76 = scmp.ne.s32.totalorder %s64, %s65
      %p77 = scmp.eq.s32.totalorder %s27, 3
      %p78 = por %p76, %p77
      %p80 = scmp.ne.s32.totalorder %s65, %s79
      %p81 = scmp.eq.s32.totalorder %s27, 0
      %p82 = por %p80, %p81
      %s84 = sadd.s32 %s83, 1
      %p87 = scmp.eq.s32.totalorder %s21, 3
      %p88 = scmp.ne.s32.totalorder %s83, %s85
      %p89 = scmp.eq.s32.totalorder %s21, 0
      %p90 = por %p88, %p89
      %p91 = scmp.ne.s32.totalorder %s83, %s85
      %p92 = scmp.eq.s32.totalorder %s26, 3
      %p93 = por %p91, %p92
      %p94 = scmp.ne.s32.totalorder %s85, %s86
      %p95 = scmp.eq.s32.totalorder %s26, 0
      %p96 = por %p94, %p95
      %p97 = scmp.ne.s32.totalorder %s85, %s86
      %p98 = scmp.eq.s32.totalorder %s27, 3
      %p99 = por %p97, %p98
      %p101 = scmp.ne.s32.totalorder %s86, %s100
      %p102 = scmp.eq.s32.totalorder %s27, 0
      %p103 = por %p101, %p102
      %s105 = sadd.s32 %s104, 1
      %p108 = scmp.eq.s32.totalorder %s21, 3
      %p109 = scmp.ne.s32.totalorder %s104, %s106
      %p110 = scmp.eq.s32.totalorder %s21, 0
      %p111 = por %p109, %p110
      %p112 = scmp.ne.s32.totalorder %s104, %s106
      %p113 = scmp.eq.s32.totalorder %s26, 3
      %p114 = por %p112, %p113
      %p115 = scmp.ne.s32.totalorder %s106, %s107
      %p116 = scmp.eq.s32.totalorder %s26, 0
      %p117 = por %p115, %p116
      %p118 = scmp.ne.s32.totalorder %s106, %s107
      %p119 = scmp.eq.s32.totalorder %s27, 3
      %p120 = por %p118, %p119
      %p122 = scmp.ne.s32.totalorder %s107, %s121
      %p123 = scmp.eq.s32.totalorder %s27, 0
      %p124 = por %p122, %p123
      %s126 = sadd.s32 %s125, 1
      %p129 = scmp.eq.s32.totalorder %s21, 3
      %p130 = scmp.ne.s32.totalorder %s125, %s127
      %p131 = scmp.eq.s32.totalorder %s21, 0
      %p132 = por %p130, %p131
      %p133 = scmp.ne.s32.totalorder %s125, %s127
      %p134 = scmp.eq.s32.totalorder %s26, 3
      %p135 = por %p133, %p134
      %p136 = scmp.ne.s32.totalorder %s127, %s128
      %p137 = scmp.eq.s32.totalorder %s26, 0
      %p138 = por %p136, %p137
      %p139 = scmp.ne.s32.totalorder %s127, %s128
      %p140 = scmp.eq.s32.totalorder %s27, 3
      %p141 = por %p139, %p140
      %p143 = scmp.ne.s32.totalorder %s128, %s142
      %p144 = scmp.eq.s32.totalorder %s27, 0
      %p145 = por %p143, %p144
      %s147 = sadd.s32 %s146, 1
      %p150 = scmp.eq.s32.totalorder %s21, 3
      %p151 = scmp.ne.s32.totalorder %s146, %s148
      %p152 = scmp.eq.s32.totalorder %s21, 0
      %p153 = por %p151, %p152
      %p154 = scmp.ne.s32.totalorder %s146, %s148
      %p155 = scmp.eq.s32.totalorder %s26, 3
      %p156 = por %p154, %p155
      %p157 = scmp.ne.s32.totalorder %s148, %s149
      %p158 = scmp.eq.s32.totalorder %s26, 0
      %p159 = por %p157, %p158
      %p160 = scmp.ne.s32.totalorder %s148, %s149
      %p161 = scmp.eq.s32.totalorder %s27, 3
      %p162 = por %p160, %p161
      %p164 = scmp.ne.s32.totalorder %s149, %s163
      %p165 = scmp.eq.s32.totalorder %s27, 0
      %p166 = por %p164, %p165
      %s168 = sadd.s32 %s167, 1
      %p171 = scmp.eq.s32.totalorder %s21, 3
      %p172 = scmp.ne.s32.totalorder %s167, %s169
      %p173 = scmp.eq.s32.totalorder %s21, 0
      %p174 = por %p172, %p173
      %p175 = scmp.ne.s32.totalorder %s167, %s169
      %p176 = scmp.eq.s32.totalorder %s26, 3
      %p177 = por %p175, %p176
      %p178 = scmp.ne.s32.totalorder %s169, %s170
      %p179 = scmp.eq.s32.totalorder %s26, 0
      %p180 = por %p178, %p179
      %p181 = scmp.ne.s32.totalorder %s169, %s170
      %p182 = scmp.eq.s32.totalorder %s27, 3
      %p183 = por %p181, %p182
      %p185 = scmp.ne.s32.totalorder %s170, %s184
      %p186 = scmp.eq.s32.totalorder %s27, 0
      %p187 = por %p185, %p186
      %s189 = sadd.s32 %s188, 1
      %p192 = scmp.eq.s32.totalorder %s21, 3
      %p193 = scmp.ne.s32.totalorder %s188, %s190
      %p194 = scmp.eq.s32.totalorder %s21, 0
      %p195 = por %p193, %p194
      %p196 = scmp.ne.s32.totalorder %s188, %s190
      %p197 = scmp.eq.s32.totalorder %s26, 3
      %p198 = por %p196, %p197
      %p199 = scmp.ne.s32.totalorder %s190, %s191
      %p200 = scmp.eq.s32.totalorder %s26, 0
      %p201 = por %p199, %p200
      %p202 = scmp.ne.s32.totalorder %s190, %s191
      %p203 = scmp.eq.s32.totalorder %s27, 3
      %p204 = por %p202, %p203
      %p206 = scmp.ne.s32.totalorder %s191, %s205
      %p207 = scmp.eq.s32.totalorder %s27, 0
      %p208 = por %p206, %p207
      %s209 = ssub.s32 %s28, %s40
      %s210 = ssub.s32 %s29, %s36
      %s211 = sor.u32 %s209, %s210
      %p212 = scmp.eq.s32.totalorder %s211, 0
      %s214 = sadd.s32 %s213, 1
      %s215 = scalar_select %p212, %s213, %s214
      %p218 = pneg %p212
      %p219 = scmp.eq.s32.totalorder %s21, 3
      %p220 = por %p218, %p219
      %p221 = scmp.ne.s32.totalorder %s213, %s216
      %p222 = scmp.eq.s32.totalorder %s21, 0
      %p223 = por %p221, %p222
      %p224 = scmp.ne.s32.totalorder %s213, %s216
      %p225 = scmp.eq.s32.totalorder %s26, 3
      %p226 = por %p224, %p225
      %p227 = scmp.ne.s32.totalorder %s216, %s217
      %p228 = scmp.eq.s32.totalorder %s26, 0
      %p229 = por %p227, %p228
      %p230 = scmp.ne.s32.totalorder %s216, %s217
      %p231 = scmp.eq.s32.totalorder %s27, 3
      %p232 = por %p230, %p231
      %p234 = scmp.ne.s32.totalorder %s217, %s233
      %p235 = scmp.eq.s32.totalorder %s27, 0
      %p236 = por %p234, %p235
      %p237 = scmp.le.s32.totalorder 1, %s21
      %p238 = scmp.lt.s32.totalorder %s21, 5
      %p239 = pnand %p237, %p238
      %p240 = pneg %p239
      // Predicated region
      $region9: #{tpu_custom_call.1} parent=5 // pred_check
        _
      $region10: #{tpu_custom_call.1} parent=5 // pred_check_branch
        %242 = sbr.rel (%p239) target = $region12
      $region11: #{tpu_custom_call.1} parent=5 // pred_region
        %s243 = ssub.s32 %s21, 1
        // Predicated region
        $region13: #{tpu_custom_call.1} parent=11 // pred_check
          %p244 = pneg %p54
        $region14: #{tpu_custom_call.1} parent=11 // pred_check_branch
          %246 = sbr.rel (%p244) target = $region16
        $region15: #{tpu_custom_call.1} parent=11 // pred_region
          %s248 = ssub.s32 1024, 1024
          %249 = vsyncadd [#allocation5], %s248
          %s250 = sshll.u32 [#allocation4], 4
          %s251 = int_to_ptr.vmem [resolvable:$true] %s250
          %256 = dma.hbm_to_vmem [thread:$0]  %s1, 1024, %s251, [#allocation5], 64, 64, 4
        $region16: #{tpu_custom_call.1} parent=11 // pred_fallthru
          _
        // Predicated region
        $region17: #{tpu_custom_call.1} parent=11 // pred_check
          %p257 = pneg %p75
        $region18: #{tpu_custom_call.1} parent=11 // pred_check_branch
          %259 = sbr.rel (%p257) target = $region20
        $region19: #{tpu_custom_call.1} parent=11 // pred_region
          _
        $region20: #{tpu_custom_call.1} parent=11 // pred_fallthru
          _
        // Predicated region
        $region21: #{tpu_custom_call.1} parent=11 // pred_check
          %p260 = pneg %p96
        $region22: #{tpu_custom_call.1} parent=11 // pred_check_branch
          %262 = sbr.rel (%p260) target = $region24
        $region23: #{tpu_custom_call.1} parent=11 // pred_region
          %s264 = ssub.s32 256, 256
          %265 = vsyncadd [#allocation8], %s264
          %s266 = sshll.u32 [#allocation7], 4
          %s267 = int_to_ptr.vmem [resolvable:$true] %s266
          %272 = dma.hbm_to_vmem [thread:$0]  %s3, 256, %s267, [#allocation8], 128, 128, 8
        $region24: #{tpu_custom_call.1} parent=11 // pred_fallthru
          _
        // Predicated region
        $region25: #{tpu_custom_call.1} parent=11 // pred_check
          %p273 = pneg %p117
        $region26: #{tpu_custom_call.1} parent=11 // pred_check_branch
          %275 = sbr.rel (%p273) target = $region28
        $region27: #{tpu_custom_call.1} parent=11 // pred_region
          _
        $region28: #{tpu_custom_call.1} parent=11 // pred_fallthru
          _
        // Predicated region
        $region29: #{tpu_custom_call.1} parent=11 // pred_check
          %p276 = pneg %p138
        $region30: #{tpu_custom_call.1} parent=11 // pred_check_branch
          %278 = sbr.rel (%p276) target = $region32
        $region31: #{tpu_custom_call.1} parent=11 // pred_region
          %s280 = ssub.s32 1024, 1024
          %281 = vsyncadd [#allocation8], %s280
          %s282 = sshll.u32 [#allocation9], 4
          %s283 = int_to_ptr.vmem [resolvable:$true] %s282
          %288 = dma.hbm_to_vmem [thread:$0]  %s5, 1024, %s283, [#allocation8], 64, 64, 4
        $region32: #{tpu_custom_call.1} parent=11 // pred_fallthru
          _
        // Predicated region
        $region33: #{tpu_custom_call.1} parent=11 // pred_check
          %p289 = pneg %p159
        $region34: #{tpu_custom_call.1} parent=11 // pred_check_branch
          %291 = sbr.rel (%p289) target = $region36
        $region35: #{tpu_custom_call.1} parent=11 // pred_region
          _
        $region36: #{tpu_custom_call.1} parent=11 // pred_fallthru
          _
        // Predicated region
        $region37: #{tpu_custom_call.1} parent=11 // pred_check
          %p292 = pneg %p180
        $region38: #{tpu_custom_call.1} parent=11 // pred_check_branch
          %294 = sbr.rel (%p292) target = $region40
        $region39: #{tpu_custom_call.1} parent=11 // pred_region
          %s296 = ssub.s32 1024, 1024
          %297 = vsyncadd [#allocation11], %s296
          %s298 = sshll.u32 [#allocation10], 4
          %s299 = int_to_ptr.vmem [resolvable:$true] %s298
          %304 = dma.hbm_to_vmem [thread:$0]  %s7, 1024, %s299, [#allocation11], 64, 64, 4
        $region40: #{tpu_custom_call.1} parent=11 // pred_fallthru
          _
        // Predicated region
        $region41: #{tpu_custom_call.1} parent=11 // pred_check
          %p305 = pneg %p201
        $region42: #{tpu_custom_call.1} parent=11 // pred_check_branch
          %307 = sbr.rel (%p305) target = $region44
        $region43: #{tpu_custom_call.1} parent=11 // pred_region
          _
        $region44: #{tpu_custom_call.1} parent=11 // pred_fallthru
          _
      $region12: #{tpu_custom_call.1} parent=5 // pred_fallthru
        _
      %p308 = scmp.lt.s32.totalorder %s21, 4
      // Predicated region
      $region45: #{tpu_custom_call.1} parent=5 // pred_check
        %p309 = pneg %p308
      $region46: #{tpu_custom_call.1} parent=5 // pred_check_branch
        %311 = sbr.rel (%p309) target = $region48
      $region47: #{tpu_custom_call.1} parent=5 // pred_region
        _
      $region48: #{tpu_custom_call.1} parent=5 // pred_fallthru
        _
      %p312 = scmp.le.s32.totalorder 1, %s21
      %p313 = scmp.lt.s32.totalorder %s21, 5
      %p314 = pnand %p312, %p313
      %p315 = pneg %p314
      // Predicated region
      $region49: #{tpu_custom_call.1} parent=5 // pred_check
        _
      $region50: #{tpu_custom_call.1} parent=5 // pred_check_branch
        %317 = sbr.rel (%p314) target = $region52
      $region51: #{tpu_custom_call.1} parent=5 // pred_region
        %s318 = ssub.s32 %s21, 1
        // Predicated region
        $region53: #{tpu_custom_call.1} parent=51 // pred_check
          %p319 = pneg %p54
        $region54: #{tpu_custom_call.1} parent=51 // pred_check_branch
          %321 = sbr.rel (%p319) target = $region56
        $region55: #{tpu_custom_call.1} parent=51 // pred_region
          %322 = dma.done [#allocation5], 1024
        $region56: #{tpu_custom_call.1} parent=51 // pred_fallthru
          _
        // Predicated region
        $region57: #{tpu_custom_call.1} parent=51 // pred_check
          %p323 = pneg %p96
        $region58: #{tpu_custom_call.1} parent=51 // pred_check_branch
          %325 = sbr.rel (%p323) target = $region60
        $region59: #{tpu_custom_call.1} parent=51 // pred_region
          %326 = dma.done [#allocation8], 256
        $region60: #{tpu_custom_call.1} parent=51 // pred_fallthru
          _
        // Predicated region
        $region61: #{tpu_custom_call.1} parent=51 // pred_check
          %p327 = pneg %p138
        $region62: #{tpu_custom_call.1} parent=51 // pred_check_branch
          %329 = sbr.rel (%p327) target = $region64
        $region63: #{tpu_custom_call.1} parent=51 // pred_region
          %330 = dma.done [#allocation8], 1024
        $region64: #{tpu_custom_call.1} parent=51 // pred_fallthru
          _
        // Predicated region
        $region65: #{tpu_custom_call.1} parent=51 // pred_check
          %p331 = pneg %p180
        $region66: #{tpu_custom_call.1} parent=51 // pred_check_branch
          %333 = sbr.rel (%p331) target = $region68
        $region67: #{tpu_custom_call.1} parent=51 // pred_region
          %334 = dma.done [#allocation11], 1024
        $region68: #{tpu_custom_call.1} parent=51 // pred_fallthru
          _
        %p335 = pneg %p54
        %p336 = pneg %p51
        %p337 = pneg %p75
        %p338 = pneg %p72
        %p339 = pneg %p96
        %p340 = pneg %p93
        %p341 = pneg %p117
        %p342 = pneg %p114
        %p343 = pneg %p138
        %p344 = pneg %p135
        %p345 = pneg %p159
        %p346 = pneg %p156
        %p347 = pneg %p180
        %p348 = pneg %p177
        %p349 = pneg %p201
        %p350 = pneg %p198
        %p351 = pneg %p229
        %p352 = pneg %p226
        %s353 = sand.u32 %s216, 1
        %s354 = scalar_lea.sflag [#allocation6], %s353
        %s355 = sand.u32 %s216, 1
        %s356 = smul.addr %s355, 128
        %s357 = scalar_lea.vmem [#allocation12], %s356
        %s358 = smul.u32 8, %s31
        %s360 = smul.u32 %s31, 8
        %s361 = smul.u32 %s360, 24
        %s362 = smul.u32 %s30, 432
        %s363 = sadd.s32 %s361, %s362
        %s364 = smul.addr %s363, 16
        %s365 = scalar_lea.hbm %s0, %s364
        // Predicated region
        $region69: #{tpu_custom_call.1} parent=51 // pred_check
          _
        $region70: #{tpu_custom_call.1} parent=51 // pred_check_branch
          %367 = sbr.rel target = $region72
        $region71: #{tpu_custom_call.1} parent=51 // pred_region
          %368 = sst [smem:[#allocation15]] [#allocation14]
          %369 = sst [smem:[#allocation16]] [#allocation13]
        $region72: #{tpu_custom_call.1} parent=51 // pred_fallthru
          _
        %371 = shalt.err (0)
        %s373 = sshll.u32 [#allocation2], 4
        %s374 = int_to_ptr.vmem [resolvable:$true] %s373
        %376 = dma.hbm_to_vmem [thread:$0]  %s365, 3840, %s374, [#allocation3]
        %s377 = smul.u32 10, 24
        %s378 = smul.u32 %s377, 1
        %s379 = sshll.u32 %s378, 4
        %380 = dma.done [#allocation3], %s379
        %v381 = vld [vmem:[#allocation2] sm:$0xff]
        %v382 = vld [vmem:[#allocation2 + $0x8] sm:$0xff]
        %v383 = vld [vmem:[#allocation2 + $0x10] sm:$0xff]
        %v384 = vld [vmem:[#allocation2 + $0x18] sm:$0xff]
        %v385 = vld [vmem:[#allocation2 + $0x20] sm:$0xff]
        %v386 = vld [vmem:[#allocation2 + $0x28] sm:$0xff]
        %v387 = vld [vmem:[#allocation2 + $0x30] sm:$0xff]
        %v388 = vld [vmem:[#allocation2 + $0x38] sm:$0xff]
        %v389 = vld [vmem:[#allocation2 + $0x40] sm:$0xff]
        %v390 = vld [vmem:[#allocation2 + $0x48] sm:$0xff]
        %v391 = vld [vmem:[#allocation2 + $0x50] sm:$0xff]
        %v392 = vld [vmem:[#allocation2 + $0x58] sm:$0xff]
        %v393 = vld [vmem:[#allocation2 + $0x60] sm:$0xff]
        %v394 = vld [vmem:[#allocation2 + $0x68] sm:$0xff]
        %v395 = vld [vmem:[#allocation2 + $0x70] sm:$0xff]
        %v396 = vld [vmem:[#allocation2 + $0x78] sm:$0xff]
        %v397 = vld [vmem:[#allocation2 + $0x80] sm:$0xff]
        %v398 = vld [vmem:[#allocation2 + $0x88] sm:$0xff]
        %v399 = vld [vmem:[#allocation2 + $0x90] sm:$0xff]
        %v400 = vld [vmem:[#allocation2 + $0x98] sm:$0xff]
        %v401 = vld [vmem:[#allocation2 + $0xa0] sm:$0xff]
        %v402 = vld [vmem:[#allocation2 + $0xa8] sm:$0xff]
        %v403 = vld [vmem:[#allocation2 + $0xb0] sm:$0xff]
        %v404 = vld [vmem:[#allocation2 + $0xb8] sm:$0xff]
        %v405 = vld [vmem:[#allocation2 + $0xc0] sm:$0xff]
        %v406 = vld [vmem:[#allocation2 + $0xc8] sm:$0xff]
        %v407 = vld [vmem:[#allocation2 + $0xd0] sm:$0xff]
        %v408 = vld [vmem:[#allocation2 + $0xd8] sm:$0xff]
        %v409 = vld [vmem:[#allocation2 + $0xe0] sm:$0xff]
        %v410 = vld [vmem:[#allocation2 + $0xe8] sm:$0xff]
        %v411 = vpack.c.bf16 %v382, %v381
        %v412 = vpack.c.bf16 %v384, %v383
        %v413 = vpack.c.bf16 %v386, %v385
        %v414 = vpack.c.bf16 %v388, %v387
        %v415 = vpack.c.bf16 %v390, %v389
        %v416 = vpack.c.bf16 %v392, %v391
        %v417 = vpack.c.bf16 %v394, %v393
        %v418 = vpack.c.bf16 %v396, %v395
        %v419 = vpack.c.bf16 %v398, %v397
        %v420 = vpack.c.bf16 %v400, %v399
        %v421 = vpack.c.bf16 %v402, %v401
        %v422 = vpack.c.bf16 %v404, %v403
        %v423 = vpack.c.bf16 %v406, %v405
        %v424 = vpack.c.bf16 %v408, %v407
        %v425 = vpack.c.bf16 %v410, %v409
        %v426 = vld [vmem:[#allocation4] sm:$0xf]
        %v427 = vld [vmem:[#allocation4 + $0x4] sm:$0xf]
        %v428 = vld [vmem:[#allocation4 + $0x8] sm:$0xf]
        %v429 = vld [vmem:[#allocation4 + $0xc] sm:$0xf]
        %v430 = vld [vmem:[#allocation4 + $0x10] sm:$0xf]
        %v431 = vld [vmem:[#allocation4 + $0x14] sm:$0xf]
        %v432 = vld [vmem:[#allocation4 + $0x18] sm:$0xf]
        %v433 = vld [vmem:[#allocation4 + $0x1c] sm:$0xf]
        %v434 = vld [vmem:[#allocation4 + $0x20] sm:$0xf]
        %v435 = vld [vmem:[#allocation4 + $0x24] sm:$0xf]
        %v436 = vld [vmem:[#allocation4 + $0x28] sm:$0xf]
        %v437 = vld [vmem:[#allocation4 + $0x2c] sm:$0xf]
        %v438 = vld [vmem:[#allocation4 + $0x30] sm:$0xf]
        %v439 = vld [vmem:[#allocation4 + $0x34] sm:$0xf]
        %v440 = vld [vmem:[#allocation4 + $0x38] sm:$0xf]
        %v441 = vld [vmem:[#allocation4 + $0x3c] sm:$0xf]
        %v442 = vld [vmem:[%s2] sm:$0x1]
        %v444 = vlaneseq
        %v445 = vshrl.u32 %v444, 7
        %v446 = vsub.s32 0, %v445
        %v447 = vrot.slane %v442, %v446
        %v465 = vunpack.c.l.b16 %v426
        %v466 = vunpack.c.l.b16 %v427
        %v467 = vunpack.c.l.b16 %v428
        %v468 = vunpack.c.l.b16 %v429
        %v469 = vunpack.c.l.b16 %v430
        %v470 = vunpack.c.l.b16 %v431
        %v471 = vunpack.c.l.b16 %v432
        %v472 = vunpack.c.l.b16 %v433
        %v473 = vunpack.c.l.b16 %v434
        %v474 = vunpack.c.l.b16 %v435
        %v475 = vunpack.c.l.b16 %v436
        %v476 = vunpack.c.l.b16 %v437
        %v477 = vunpack.c.l.b16 %v438
        %v478 = vunpack.c.l.b16 %v439
        %v479 = vunpack.c.l.b16 %v440
        %v480 = vunpack.c.l.b16 %v441
        %v481 = vpack.c.b16 %v466, %v465
        %v482 = vpack.c.b16 %v468, %v467
        %v483 = vpack.c.b16 %v470, %v469
        %v484 = vpack.c.b16 %v472, %v471
        %v485 = vpack.c.b16 %v474, %v473
        %v486 = vpack.c.b16 %v476, %v475
        %v487 = vpack.c.b16 %v478, %v477
        %v488 = vpack.c.b16 %v480, %v479
        %497 = vmatprep.subr.bf16.mxu0 0
        %498 = vmatpush1.bf16.msra.mxu0 %v488
        %499 = vmatprep.subr.bf16.mxu0 0
        %500 = vmatpush1.bf16.msra.mxu0 %v487
        %501 = vmatprep.subr.bf16.mxu0 0
        %502 = vmatpush1.bf16.msra.mxu0 %v486
        %503 = vmatprep.subr.bf16.mxu0 0
        %504 = vmatpush1.bf16.msra.mxu0 %v485
        %505 = vmatprep.subr.bf16.mxu0 0
        %506 = vmatpush1.bf16.msra.mxu0 %v484
        %507 = vmatprep.subr.bf16.mxu0 0
        %508 = vmatpush1.bf16.msra.mxu0 %v483
        %509 = vmatprep.subr.bf16.mxu0 0
        %510 = vmatpush1.bf16.msra.mxu0 %v482
        %511 = vmatprep.subr.bf16.mxu0 0
        %512 = vmatpush1.bf16.msra.mxu0 %v481
        %513 = vmatprep.subr.bf16.mxu0 0
        %514 = vmatpush2.bf16.msra.mxu0 0
        %515 = vmatprep.subr.bf16.mxu0 0
        %516 = vmatpush2.bf16.msra.mxu0 0
        %517 = vmatprep.subr.bf16.mxu0 0
        %518 = vmatpush2.bf16.msra.mxu0 0
        %519 = vmatprep.subr.bf16.mxu0 0
        %520 = vmatpush2.bf16.msra.mxu0 0
        %521 = vmatprep.subr.bf16.mxu0 0
        %522 = vmatpush2.bf16.msra.mxu0 0
        %523 = vmatprep.subr.bf16.mxu0 0
        %524 = vmatpush2.bf16.msra.mxu0 0
        %525 = vmatprep.subr.bf16.mxu0 0
        %526 = vmatpush2.bf16.msra.mxu0 0
        %527 = vmatprep.subr.bf16.mxu0 0
        %528 = vmatpush2.bf16.msra.mxu0 0
        %529 = vmatprep.mubr.bf16.mxu0 0
        %530 = vmatmul.mubr.bf16.gmra.mxu0 %v411
        %v531 = vpop.f32.mrf.mxu0
        %v532 = vadd.f32 %v447, %v531
        %v533 = vpop.f32.mrf.mxu0
        %v534 = vpop.f32.mrf.mxu0
        %v535 = vadd.f32 %v447, %v534
        %v536 = vpop.f32.mrf.mxu0
        %537 = vmatprep.mubr.bf16.mxu0 0
        %538 = vmatmul.mubr.bf16.gmra.mxu0 %v412
        %v539 = vpop.f32.mrf.mxu0
        %v540 = vadd.f32 %v447, %v539
        %v541 = vpop.f32.mrf.mxu0
        %v542 = vpop.f32.mrf.mxu0
        %v543 = vadd.f32 %v447, %v542
        %v544 = vpop.f32.mrf.mxu0
        %545 = vmatprep.mubr.bf16.mxu0 0
        %546 = vmatmul.mubr.bf16.gmra.mxu0 %v413
        %v547 = vpop.f32.mrf.mxu0
        %v548 = vadd.f32 %v447, %v547
        %v549 = vpop.f32.mrf.mxu0
        %v550 = vpop.f32.mrf.mxu0
        %v551 = vadd.f32 %v447, %v550
        %v552 = vpop.f32.mrf.mxu0
        %553 = vmatprep.mubr.bf16.mxu0 0
        %554 = vmatmul.mubr.bf16.gmra.mxu0 %v414
        %v555 = vpop.f32.mrf.mxu0
        %v556 = vadd.f32 %v447, %v555
        %v557 = vpop.f32.mrf.mxu0
        %v558 = vpop.f32.mrf.mxu0
        %v559 = vadd.f32 %v447, %v558
        %v560 = vpop.f32.mrf.mxu0
        %561 = vmatprep.mubr.bf16.mxu0 0
        %562 = vmatmul.mubr.bf16.gmra.mxu0 %v415
        %v563 = vpop.f32.mrf.mxu0
        %v564 = vadd.f32 %v447, %v563
        %v565 = vpop.f32.mrf.mxu0
        %v566 = vpop.f32.mrf.mxu0
        %v567 = vadd.f32 %v447, %v566
        %v568 = vpop.f32.mrf.mxu0
        %569 = vmatprep.mubr.bf16.mxu0 0
        %570 = vmatmul.mubr.bf16.gmra.mxu0 %v416
        %v571 = vpop.f32.mrf.mxu0
        %v572 = vadd.f32 %v447, %v571
        %v573 = vpop.f32.mrf.mxu0
        %v574 = vpop.f32.mrf.mxu0
        %v575 = vadd.f32 %v447, %v574
        %v576 = vpop.f32.mrf.mxu0
        %577 = vmatprep.mubr.bf16.mxu0 0
        %578 = vmatmul.mubr.bf16.gmra.mxu0 %v417
        %v579 = vpop.f32.mrf.mxu0
        %v580 = vadd.f32 %v447, %v579
        %v581 = vpop.f32.mrf.mxu0
        %v582 = vpop.f32.mrf.mxu0
        %v583 = vadd.f32 %v447, %v582
        %v584 = vpop.f32.mrf.mxu0
        %585 = vmatprep.mubr.bf16.mxu0 0
        %586 = vmatmul.mubr.bf16.gmra.mxu0 %v418
        %v587 = vpop.f32.mrf.mxu0
        %v588 = vadd.f32 %v447, %v587
        %v589 = vpop.f32.mrf.mxu0
        %v590 = vpop.f32.mrf.mxu0
        %v591 = vadd.f32 %v447, %v590
        %v592 = vpop.f32.mrf.mxu0
        %593 = vmatprep.mubr.bf16.mxu0 0
        %594 = vmatmul.mubr.bf16.gmra.mxu0 %v419
        %v595 = vpop.f32.mrf.mxu0
        %v596 = vadd.f32 %v447, %v595
        %v597 = vpop.f32.mrf.mxu0
        %v598 = vpop.f32.mrf.mxu0
        %v599 = vadd.f32 %v447, %v598
        %v600 = vpop.f32.mrf.mxu0
        %601 = vmatprep.mubr.bf16.mxu0 0
        %602 = vmatmul.mubr.bf16.gmra.mxu0 %v420
        %v603 = vpop.f32.mrf.mxu0
        %v604 = vadd.f32 %v447, %v603
        %v605 = vpop.f32.mrf.mxu0
        %v606 = vpop.f32.mrf.mxu0
        %v607 = vadd.f32 %v447, %v606
        %v608 = vpop.f32.mrf.mxu0
        %609 = vmatprep.mubr.bf16.mxu0 0
        %610 = vmatmul.mubr.bf16.gmra.mxu0 %v421
        %v611 = vpop.f32.mrf.mxu0
        %v612 = vadd.f32 %v447, %v611
        %v613 = vpop.f32.mrf.mxu0
        %v614 = vpop.f32.mrf.mxu0
        %v615 = vadd.f32 %v447, %v614
        %v616 = vpop.f32.mrf.mxu0
        %617 = vmatprep.mubr.bf16.mxu0 0
        %618 = vmatmul.mubr.bf16.gmra.mxu0 %v422
        %v619 = vpop.f32.mrf.mxu0
        %v620 = vadd.f32 %v447, %v619
        %v621 = vpop.f32.mrf.mxu0
        %v622 = vpop.f32.mrf.mxu0
        %v623 = vadd.f32 %v447, %v622
        %v624 = vpop.f32.mrf.mxu0
        %625 = vmatprep.mubr.bf16.mxu0 0
        %626 = vmatmul.mubr.bf16.gmra.mxu0 %v423
        %v627 = vpop.f32.mrf.mxu0
        %v628 = vadd.f32 %v447, %v627
        %v629 = vpop.f32.mrf.mxu0
        %v630 = vpop.f32.mrf.mxu0
        %v631 = vadd.f32 %v447, %v630
        %v632 = vpop.f32.mrf.mxu0
        %633 = vmatprep.mubr.bf16.mxu0 0
        %634 = vmatmul.mubr.bf16.gmra.mxu0 %v424
        %v635 = vpop.f32.mrf.mxu0
        %v636 = vadd.f32 %v447, %v635
        %v637 = vpop.f32.mrf.mxu0
        %v638 = vpop.f32.mrf.mxu0
        %v639 = vadd.f32 %v447, %v638
        %v640 = vpop.f32.mrf.mxu0
        %641 = vmatprep.mubr.bf16.mxu0 0
        %642 = vmatmul.mubr.bf16.gmra.mxu0 %v425
        %v643 = vpop.f32.mrf.mxu0
        %v644 = vadd.f32 %v447, %v643
        %v645 = vpop.f32.mrf.mxu0
        %v646 = vpop.f32.mrf.mxu0
        %v647 = vadd.f32 %v447, %v646
        %v648 = vpop.f32.mrf.mxu0
        %649 = vdwg.mxu0
        %v650 = vmax.f32 %v532, 0.0
        %v651 = vmax.f32 %v535, 0.0
        %v652 = vmax.f32 %v540, 0.0
        %v653 = vmax.f32 %v543, 0.0
        %v654 = vmax.f32 %v548, 0.0
        %v655 = vmax.f32 %v551, 0.0
        %v656 = vmax.f32 %v556, 0.0
        %v657 = vmax.f32 %v559, 0.0
        %v658 = vmax.f32 %v564, 0.0
        %v659 = vmax.f32 %v567, 0.0
        %v660 = vmax.f32 %v572, 0.0
        %v661 = vmax.f32 %v575, 0.0
        %v662 = vmax.f32 %v580, 0.0
        %v663 = vmax.f32 %v583, 0.0
        %v664 = vmax.f32 %v588, 0.0
        %v665 = vmax.f32 %v591, 0.0
        %v666 = vmax.f32 %v596, 0.0
        %v667 = vmax.f32 %v599, 0.0
        %v668 = vmax.f32 %v604, 0.0
        %v669 = vmax.f32 %v607, 0.0
        %v670 = vmax.f32 %v612, 0.0
        %v671 = vmax.f32 %v615, 0.0
        %v672 = vmax.f32 %v620, 0.0
        %v673 = vmax.f32 %v623, 0.0
        %v674 = vmax.f32 %v628, 0.0
        %v675 = vmax.f32 %v631, 0.0
        %v676 = vmax.f32 %v636, 0.0
        %v677 = vmax.f32 %v639, 0.0
        %v678 = vmax.f32 %v644, 0.0
        %v679 = vmax.f32 %v647, 0.0
        %v680 = vmin.f32 %v650, 6.0
        %v681 = vmin.f32 %v651, 6.0
        %v682 = vmin.f32 %v652, 6.0
        %v683 = vmin.f32 %v653, 6.0
        %v684 = vmin.f32 %v654, 6.0
        %v685 = vmin.f32 %v655, 6.0
        %v686 = vmin.f32 %v656, 6.0
        %v687 = vmin.f32 %v657, 6.0
        %v688 = vmin.f32 %v658, 6.0
        %v689 = vmin.f32 %v659, 6.0
        %v690 = vmin.f32 %v660, 6.0
        %v691 = vmin.f32 %v661, 6.0
        %v692 = vmin.f32 %v662, 6.0
        %v693 = vmin.f32 %v663, 6.0
        %v694 = vmin.f32 %v664, 6.0
        %v695 = vmin.f32 %v665, 6.0
        %v696 = vmin.f32 %v666, 6.0
        %v697 = vmin.f32 %v667, 6.0
        %v698 = vmin.f32 %v668, 6.0
        %v699 = vmin.f32 %v669, 6.0
        %v700 = vmin.f32 %v670, 6.0
        %v701 = vmin.f32 %v671, 6.0
        %v702 = vmin.f32 %v672, 6.0
        %v703 = vmin.f32 %v673, 6.0
        %v704 = vmin.f32 %v674, 6.0
        %v705 = vmin.f32 %v675, 6.0
        %v706 = vmin.f32 %v676, 6.0
        %v707 = vmin.f32 %v677, 6.0
        %v708 = vmin.f32 %v678, 6.0
        %v709 = vmin.f32 %v679, 6.0
        %v710 = vstv %s360
        %v711 = vadd.s32 %v710, 1
        %v712 = vadd.s32 %v710, 2
        %v713 = vadd.s32 %v710, 3
        %v714 = vadd.s32 %v710, 4
        %v715 = vadd.s32 %v710, 5
        %v716 = vadd.s32 %v710, 6
        %v717 = vadd.s32 %v710, 7
        %v718 = vadd.s32 %v710, 8
        %v719 = vadd.s32 %v710, 9
        %v720 = vlaneseq
        %v721 = vshrl.u32 %v720, 7
        %v722 = vadd.s32 %v721, 8
        %v723 = vadd.s32 %v721, 16
        %vm724 = vcmp.ge.s32.totalorder %v710, 1
        %vm725 = vcmp.ge.s32.totalorder %v711, 1
        %vm726 = vcmp.ge.s32.totalorder %v712, 1
        %vm727 = vcmp.ge.s32.totalorder %v713, 1
        %vm728 = vcmp.ge.s32.totalorder %v714, 1
        %vm729 = vcmp.ge.s32.totalorder %v715, 1
        %vm730 = vcmp.ge.s32.totalorder %v716, 1
        %vm731 = vcmp.ge.s32.totalorder %v717, 1
        %vm732 = vcmp.ge.s32.totalorder %v718, 1
        %vm733 = vcmp.ge.s32.totalorder %v719, 1
        %vm734 = vcmp.lt.s32.totalorder %v710, 17
        %vm735 = vcmp.lt.s32.totalorder %v711, 17
        %vm736 = vcmp.lt.s32.totalorder %v712, 17
        %vm737 = vcmp.lt.s32.totalorder %v713, 17
        %vm738 = vcmp.lt.s32.totalorder %v714, 17
        %vm739 = vcmp.lt.s32.totalorder %v715, 17
        %vm740 = vcmp.lt.s32.totalorder %v716, 17
        %vm741 = vcmp.lt.s32.totalorder %v717, 17
        %vm742 = vcmp.lt.s32.totalorder %v718, 17
        %vm743 = vcmp.lt.s32.totalorder %v719, 17
        %vm744 = vmand %vm724, %vm734
        %vm745 = vmand %vm725, %vm735
        %vm746 = vmand %vm726, %vm736
        %vm747 = vmand %vm727, %vm737
        %vm748 = vmand %vm728, %vm738
        %vm749 = vmand %vm729, %vm739
        %vm750 = vmand %vm730, %vm740
        %vm751 = vmand %vm731, %vm741
        %vm752 = vmand %vm732, %vm742
        %vm753 = vmand %vm733, %vm743
        %vm754 = vcmp.ge.s32.totalorder %v721, 1
        %vm755 = vcmp.ge.s32.totalorder %v722, 1
        %vm756 = vcmp.ge.s32.totalorder %v723, 1
        %vm757 = vmand %vm744, %vm754
        %vm758 = vmand %vm744, %vm755
        %vm759 = vmand %vm744, %vm756
        %vm760 = vmand %vm745, %vm754
        %vm761 = vmand %vm745, %vm755
        %vm762 = vmand %vm745, %vm756
        %vm763 = vmand %vm746, %vm754
        %vm764 = vmand %vm746, %vm755
        %vm765 = vmand %vm746, %vm756
        %vm766 = vmand %vm747, %vm754
        %vm767 = vmand %vm747, %vm755
        %vm768 = vmand %vm747, %vm756
        %vm769 = vmand %vm748, %vm754
        %vm770 = vmand %vm748, %vm755
        %vm771 = vmand %vm748, %vm756
        %vm772 = vmand %vm749, %vm754
        %vm773 = vmand %vm749, %vm755
        %vm774 = vmand %vm749, %vm756
        %vm775 = vmand %vm750, %vm754
        %vm776 = vmand %vm750, %vm755
        %vm777 = vmand %vm750, %vm756
        %vm778 = vmand %vm751, %vm754
        %vm779 = vmand %vm751, %vm755
        %vm780 = vmand %vm751, %vm756
        %vm781 = vmand %vm752, %vm754
        %vm782 = vmand %vm752, %vm755
        %vm783 = vmand %vm752, %vm756
        %vm784 = vmand %vm753, %vm754
        %vm785 = vmand %vm753, %vm755
        %vm786 = vmand %vm753, %vm756
        %vm787 = vcmp.lt.s32.totalorder %v721, 17
        %vm788 = vcmp.lt.s32.totalorder %v722, 17
        %vm789 = vcmp.lt.s32.totalorder %v723, 17
        %vm790 = vmand %vm757, %vm787
        %vm791 = vmand %vm758, %vm788
        %vm792 = vmand %vm759, %vm789
        %vm793 = vmand %vm760, %vm787
        %vm794 = vmand %vm761, %vm788
        %vm795 = vmand %vm762, %vm789
        %vm796 = vmand %vm763, %vm787
        %vm797 = vmand %vm764, %vm788
        %vm798 = vmand %vm765, %vm789
        %vm799 = vmand %vm766, %vm787
        %vm800 = vmand %vm767, %vm788
        %vm801 = vmand %vm768, %vm789
        %vm802 = vmand %vm769, %vm787
        %vm803 = vmand %vm770, %vm788
        %vm804 = vmand %vm771, %vm789
        %vm805 = vmand %vm772, %vm787
        %vm806 = vmand %vm773, %vm788
        %vm807 = vmand %vm774, %vm789
        %vm808 = vmand %vm775, %vm787
        %vm809 = vmand %vm776, %vm788
        %vm810 = vmand %vm777, %vm789
        %vm811 = vmand %vm778, %vm787
        %vm812 = vmand %vm779, %vm788
        %vm813 = vmand %vm780, %vm789
        %vm814 = vmand %vm781, %vm787
        %vm815 = vmand %vm782, %vm788
        %vm816 = vmand %vm783, %vm789
        %vm817 = vmand %vm784, %vm787
        %vm818 = vmand %vm785, %vm788
        %vm819 = vmand %vm786, %vm789
        %v820 = vsel %vm790, %v680, 0.0
        %v821 = vsel %vm791, %v681, 0.0
        %v822 = vsel %vm792, %v682, 0.0
        %v823 = vsel %vm793, %v683, 0.0
        %v824 = vsel %vm794, %v684, 0.0
        %v825 = vsel %vm795, %v685, 0.0
        %v826 = vsel %vm796, %v686, 0.0
        %v827 = vsel %vm797, %v687, 0.0
        %v828 = vsel %vm798, %v688, 0.0
        %v829 = vsel %vm799, %v689, 0.0
        %v830 = vsel %vm800, %v690, 0.0
        %v831 = vsel %vm801, %v691, 0.0
        %v832 = vsel %vm802, %v692, 0.0
        %v833 = vsel %vm803, %v693, 0.0
        %v834 = vsel %vm804, %v694, 0.0
        %v835 = vsel %vm805, %v695, 0.0
        %v836 = vsel %vm806, %v696, 0.0
        %v837 = vsel %vm807, %v697, 0.0
        %v838 = vsel %vm808, %v698, 0.0
        %v839 = vsel %vm809, %v699, 0.0
        %v840 = vsel %vm810, %v700, 0.0
        %v841 = vsel %vm811, %v701, 0.0
        %v842 = vsel %vm812, %v702, 0.0
        %v843 = vsel %vm813, %v703, 0.0
        %v844 = vsel %vm814, %v704, 0.0
        %v845 = vsel %vm815, %v705, 0.0
        %v846 = vsel %vm816, %v706, 0.0
        %v847 = vsel %vm817, %v707, 0.0
        %v848 = vsel %vm818, %v708, 0.0
        %v849 = vsel %vm819, %v709, 0.0
        %v850 = vld [vmem:[#allocation7] sm:$0xff]
        %v851 = vld [vmem:[#allocation7 + $0x8] sm:$0x1]
        %v852 = vlaneseq
        %v853 = vshrl.u32 %v852, 7
        %v854 = vsub.s32 0, %v853
        %v855 = vrot.slane %v850, %v854
        %v856 = vmul.f32 %v820, %v855
        %v857 = vmul.f32 %v821, %v855
        %v858 = vmul.f32 %v823, %v855
        %v859 = vmul.f32 %v824, %v855
        %v860 = vmul.f32 %v826, %v855
        %v861 = vmul.f32 %v827, %v855
        %v862 = vmul.f32 %v829, %v855
        %v863 = vmul.f32 %v830, %v855
        %v864 = vmul.f32 %v832, %v855
        %v865 = vmul.f32 %v833, %v855
        %v866 = vmul.f32 %v835, %v855
        %v867 = vmul.f32 %v836, %v855
        %v868 = vmul.f32 %v838, %v855
        %v869 = vmul.f32 %v839, %v855
        %v870 = vmul.f32 %v841, %v855
        %v871 = vmul.f32 %v842, %v855
        %v872 = vadd.f32 %v856, 0.0
        %v873 = vadd.f32 %v857, 0.0
        %v874 = vadd.f32 %v858, 0.0
        %v875 = vadd.f32 %v859, 0.0
        %v876 = vadd.f32 %v860, 0.0
        %v877 = vadd.f32 %v861, 0.0
        %v878 = vadd.f32 %v862, 0.0
        %v879 = vadd.f32 %v863, 0.0
        %v880 = vadd.f32 %v864, 0.0
        %v881 = vadd.f32 %v865, 0.0
        %v882 = vadd.f32 %v866, 0.0
        %v883 = vadd.f32 %v867, 0.0
        %v884 = vadd.f32 %v868, 0.0
        %v885 = vadd.f32 %v869, 0.0
        %v886 = vadd.f32 %v870, 0.0
        %v887 = vadd.f32 %v871, 0.0
        %v888 = vlaneseq
        %v889 = vshrl.u32 %v888, 7
        %v890 = vsub.s32 1, %v889
        %v891 = vrot.slane %v850, %v890
        %v892 = vmul.f32 %v820, %v891
        %v893 = vmul.f32 %v821, %v891
        %v894 = vmul.f32 %v822, %v891
        %v895 = vmul.f32 %v823, %v891
        %v896 = vmul.f32 %v824, %v891
        %v897 = vmul.f32 %v825, %v891
        %v898 = vmul.f32 %v826, %v891
        %v899 = vmul.f32 %v827, %v891
        %v900 = vmul.f32 %v828, %v891
        %v901 = vmul.f32 %v829, %v891
        %v902 = vmul.f32 %v830, %v891
        %v903 = vmul.f32 %v831, %v891
        %v904 = vmul.f32 %v832, %v891
        %v905 = vmul.f32 %v833, %v891
        %v906 = vmul.f32 %v834, %v891
        %v907 = vmul.f32 %v835, %v891
        %v908 = vmul.f32 %v836, %v891
        %v909 = vmul.f32 %v837, %v891
        %v910 = vmul.f32 %v838, %v891
        %v911 = vmul.f32 %v839, %v891
        %v912 = vmul.f32 %v840, %v891
        %v913 = vmul.f32 %v841, %v891
        %v914 = vmul.f32 %v842, %v891
        %v915 = vmul.f32 %v843, %v891
        %vm940 = vcmask 1046528
        %v941 = vrot.slane %v892, 1
        %v942 = vrot.slane %v893, 1
        %v943 = vsel %vm940, %v941, %v942
        %v944 = vrot.slane %v894, 1
        %v945 = vsel %vm940, %v942, %v944
        %v946 = vrot.slane %v895, 1
        %v947 = vrot.slane %v896, 1
        %v948 = vsel %vm940, %v946, %v947
        %v949 = vrot.slane %v897, 1
        %v950 = vsel %vm940, %v947, %v949
        %v951 = vrot.slane %v898, 1
        %v952 = vrot.slane %v899, 1
        %v953 = vsel %vm940, %v951, %v952
        %v954 = vrot.slane %v900, 1
        %v955 = vsel %vm940, %v952, %v954
        %v956 = vrot.slane %v901, 1
        %v957 = vrot.slane %v902, 1
        %v958 = vsel %vm940, %v956, %v957
        %v959 = vrot.slane %v903, 1
        %v960 = vsel %vm940, %v957, %v959
        %v961 = vrot.slane %v904, 1
        %v962 = vrot.slane %v905, 1
        %v963 = vsel %vm940, %v961, %v962
        %v964 = vrot.slane %v906, 1
        %v965 = vsel %vm940, %v962, %v964
        %v966 = vrot.slane %v907, 1
        %v967 = vrot.slane %v908, 1
        %v968 = vsel %vm940, %v966, %v967
        %v969 = vrot.slane %v909, 1
        %v970 = vsel %vm940, %v967, %v969
        %v971 = vrot.slane %v910, 1
        %v972 = vrot.slane %v911, 1
        %v973 = vsel %vm940, %v971, %v972
        %v974 = vrot.slane %v912, 1
        %v975 = vsel %vm940, %v972, %v974
        %v976 = vrot.slane %v913, 1
        %v977 = vrot.slane %v914, 1
        %v978 = vsel %vm940, %v976, %v977
        %v979 = vrot.slane %v915, 1
        %v980 = vsel %vm940, %v977, %v979
        %v997 = vadd.f32 %v872, %v943
        %v998 = vadd.f32 %v873, %v945
        %v999 = vadd.f32 %v874, %v948
        %v1000 = vadd.f32 %v875, %v950
        %v1001 = vadd.f32 %v876, %v953
        %v1002 = vadd.f32 %v877, %v955
        %v1003 = vadd.f32 %v878, %v958
        %v1004 = vadd.f32 %v879, %v960
        %v1005 = vadd.f32 %v880, %v963
        %v1006 = vadd.f32 %v881, %v965
        %v1007 = vadd.f32 %v882, %v968
        %v1008 = vadd.f32 %v883, %v970
        %v1009 = vadd.f32 %v884, %v973
        %v1010 = vadd.f32 %v885, %v975
        %v1011 = vadd.f32 %v886, %v978
        %v1012 = vadd.f32 %v887, %v980
        %v1013 = vlaneseq
        %v1014 = vshrl.u32 %v1013, 7
        %v1015 = vsub.s32 2, %v1014
        %v1016 = vrot.slane %v850, %v1015
        %v1017 = vmul.f32 %v820, %v1016
        %v1018 = vmul.f32 %v821, %v1016
        %v1019 = vmul.f32 %v822, %v1016
        %v1020 = vmul.f32 %v823, %v1016
        %v1021 = vmul.f32 %v824, %v1016
        %v1022 = vmul.f32 %v825, %v1016
        %v1023 = vmul.f32 %v826, %v1016
        %v1024 = vmul.f32 %v827, %v1016
        %v1025 = vmul.f32 %v828, %v1016
        %v1026 = vmul.f32 %v829, %v1016
        %v1027 = vmul.f32 %v830, %v1016
        %v1028 = vmul.f32 %v831, %v1016
        %v1029 = vmul.f32 %v832, %v1016
        %v1030 = vmul.f32 %v833, %v1016
        %v1031 = vmul.f32 %v834, %v1016
        %v1032 = vmul.f32 %v835, %v1016
        %v1033 = vmul.f32 %v836, %v1016
        %v1034 = vmul.f32 %v837, %v1016
        %v1035 = vmul.f32 %v838, %v1016
        %v1036 = vmul.f32 %v839, %v1016
        %v1037 = vmul.f32 %v840, %v1016
        %v1038 = vmul.f32 %v841, %v1016
        %v1039 = vmul.f32 %v842, %v1016
        %v1040 = vmul.f32 %v843, %v1016
        %vm1065 = vcmask 1045504
        %v1066 = vrot.slane %v1017, 2
        %v1067 = vrot.slane %v1018, 2
        %v1068 = vsel %vm1065, %v1066, %v1067
        %v1069 = vrot.slane %v1019, 2
        %v1070 = vsel %vm1065, %v1067, %v1069
        %v1071 = vrot.slane %v1020, 2
        %v1072 = vrot.slane %v1021, 2
        %v1073 = vsel %vm1065, %v1071, %v1072
        %v1074 = vrot.slane %v1022, 2
        %v1075 = vsel %vm1065, %v1072, %v1074
        %v1076 = vrot.slane %v1023, 2
        %v1077 = vrot.slane %v1024, 2
        %v1078 = vsel %vm1065, %v1076, %v1077
        %v1079 = vrot.slane %v1025, 2
        %v1080 = vsel %vm1065, %v1077, %v1079
        %v1081 = vrot.slane %v1026, 2
        %v1082 = vrot.slane %v1027, 2
        %v1083 = vsel %vm1065, %v1081, %v1082
        %v1084 = vrot.slane %v1028, 2
        %v1085 = vsel %vm1065, %v1082, %v1084
        %v1086 = vrot.slane %v1029, 2
        %v1087 = vrot.slane %v1030, 2
        %v1088 = vsel %vm1065, %v1086, %v1087
        %v1089 = vrot.slane %v1031, 2
        %v1090 = vsel %vm1065, %v1087, %v1089
        %v1091 = vrot.slane %v1032, 2
        %v1092 = vrot.slane %v1033, 2
        %v1093 = vsel %vm1065, %v1091, %v1092
        %v1094 = vrot.slane %v1034, 2
        %v1095 = vsel %vm1065, %v1092, %v1094
        %v1096 = vrot.slane %v1035, 2
        %v1097 = vrot.slane %v1036, 2
        %v1098 = vsel %vm1065, %v1096, %v1097
        %v1099 = vrot.slane %v1037, 2
        %v1100 = vsel %vm1065, %v1097, %v1099
        %v1101 = vrot.slane %v1038, 2
        %v1102 = vrot.slane %v1039, 2
        %v1103 = vsel %vm1065, %v1101, %v1102
        %v1104 = vrot.slane %v1040, 2
        %v1105 = vsel %vm1065, %v1102, %v1104
        %v1122 = vadd.f32 %v997, %v1068
        %v1123 = vadd.f32 %v998, %v1070
        %v1124 = vadd.f32 %v999, %v1073
        %v1125 = vadd.f32 %v1000, %v1075
        %v1126 = vadd.f32 %v1001, %v1078
        %v1127 = vadd.f32 %v1002, %v1080
        %v1128 = vadd.f32 %v1003, %v1083
        %v1129 = vadd.f32 %v1004, %v1085
        %v1130 = vadd.f32 %v1005, %v1088
        %v1131 = vadd.f32 %v1006, %v1090
        %v1132 = vadd.f32 %v1007, %v1093
        %v1133 = vadd.f32 %v1008, %v1095
        %v1134 = vadd.f32 %v1009, %v1098
        %v1135 = vadd.f32 %v1010, %v1100
        %v1136 = vadd.f32 %v1011, %v1103
        %v1137 = vadd.f32 %v1012, %v1105
        %v1138 = vlaneseq
        %v1139 = vshrl.u32 %v1138, 7
        %v1140 = vsub.s32 3, %v1139
        %v1141 = vrot.slane %v850, %v1140
        %v1142 = vmul.f32 %v823, %v1141
        %v1143 = vmul.f32 %v824, %v1141
        %v1144 = vmul.f32 %v826, %v1141
        %v1145 = vmul.f32 %v827, %v1141
        %v1146 = vmul.f32 %v829, %v1141
        %v1147 = vmul.f32 %v830, %v1141
        %v1148 = vmul.f32 %v832, %v1141
        %v1149 = vmul.f32 %v833, %v1141
        %v1150 = vmul.f32 %v835, %v1141
        %v1151 = vmul.f32 %v836, %v1141
        %v1152 = vmul.f32 %v838, %v1141
        %v1153 = vmul.f32 %v839, %v1141
        %v1154 = vmul.f32 %v841, %v1141
        %v1155 = vmul.f32 %v842, %v1141
        %v1156 = vmul.f32 %v844, %v1141
        %v1157 = vmul.f32 %v845, %v1141
        %v1158 = vadd.f32 %v1122, %v1142
        %v1159 = vadd.f32 %v1123, %v1143
        %v1160 = vadd.f32 %v1124, %v1144
        %v1161 = vadd.f32 %v1125, %v1145
        %v1162 = vadd.f32 %v1126, %v1146
        %v1163 = vadd.f32 %v1127, %v1147
        %v1164 = vadd.f32 %v1128, %v1148
        %v1165 = vadd.f32 %v1129, %v1149
        %v1166 = vadd.f32 %v1130, %v1150
        %v1167 = vadd.f32 %v1131, %v1151
        %v1168 = vadd.f32 %v1132, %v1152
        %v1169 = vadd.f32 %v1133, %v1153
        %v1170 = vadd.f32 %v1134, %v1154
        %v1171 = vadd.f32 %v1135, %v1155
        %v1172 = vadd.f32 %v1136, %v1156
        %v1173 = vadd.f32 %v1137, %v1157
        %v1174 = vlaneseq
        %v1175 = vshrl.u32 %v1174, 7
        %v1176 = vsub.s32 4, %v1175
        %v1177 = vrot.slane %v850, %v1176
        %v1178 = vmul.f32 %v823, %v1177
        %v1179 = vmul.f32 %v824, %v1177
        %v1180 = vmul.f32 %v825, %v1177
        %v1181 = vmul.f32 %v826, %v1177
        %v1182 = vmul.f32 %v827, %v1177
        %v1183 = vmul.f32 %v828, %v1177
        %v1184 = vmul.f32 %v829, %v1177
        %v1185 = vmul.f32 %v830, %v1177
        %v1186 = vmul.f32 %v831, %v1177
        %v1187 = vmul.f32 %v832, %v1177
        %v1188 = vmul.f32 %v833, %v1177
        %v1189 = vmul.f32 %v834, %v1177
        %v1190 = vmul.f32 %v835, %v1177
        %v1191 = vmul.f32 %v836, %v1177
        %v1192 = vmul.f32 %v837, %v1177
        %v1193 = vmul.f32 %v838, %v1177
        %v1194 = vmul.f32 %v839, %v1177
        %v1195 = vmul.f32 %v840, %v1177
        %v1196 = vmul.f32 %v841, %v1177
        %v1197 = vmul.f32 %v842, %v1177
        %v1198 = vmul.f32 %v843, %v1177
        %v1199 = vmul.f32 %v844, %v1177
        %v1200 = vmul.f32 %v845, %v1177
        %v1201 = vmul.f32 %v846, %v1177
        %v1226 = vrot.slane %v1178, 1
        %v1227 = vrot.slane %v1179, 1
        %v1228 = vsel %vm940, %v1226, %v1227
        %v1229 = vrot.slane %v1180, 1
        %v1230 = vsel %vm940, %v1227, %v1229
        %v1231 = vrot.slane %v1181, 1
        %v1232 = vrot.slane %v1182, 1
        %v1233 = vsel %vm940, %v1231, %v1232
        %v1234 = vrot.slane %v1183, 1
        %v1235 = vsel %vm940, %v1232, %v1234
        %v1236 = vrot.slane %v1184, 1
        %v1237 = vrot.slane %v1185, 1
        %v1238 = vsel %vm940, %v1236, %v1237
        %v1239 = vrot.slane %v1186, 1
        %v1240 = vsel %vm940, %v1237, %v1239
        %v1241 = vrot.slane %v1187, 1
        %v1242 = vrot.slane %v1188, 1
        %v1243 = vsel %vm940, %v1241, %v1242
        %v1244 = vrot.slane %v1189, 1
        %v1245 = vsel %vm940, %v1242, %v1244
        %v1246 = vrot.slane %v1190, 1
        %v1247 = vrot.slane %v1191, 1
        %v1248 = vsel %vm940, %v1246, %v1247
        %v1249 = vrot.slane %v1192, 1
        %v1250 = vsel %vm940, %v1247, %v1249
        %v1251 = vrot.slane %v1193, 1
        %v1252 = vrot.slane %v1194, 1
        %v1253 = vsel %vm940, %v1251, %v1252
        %v1254 = vrot.slane %v1195, 1
        %v1255 = vsel %vm940, %v1252, %v1254
        %v1256 = vrot.slane %v1196, 1
        %v1257 = vrot.slane %v1197, 1
        %v1258 = vsel %vm940, %v1256, %v1257
        %v1259 = vrot.slane %v1198, 1
        %v1260 = vsel %vm940, %v1257, %v1259
        %v1261 = vrot.slane %v1199, 1
        %v1262 = vrot.slane %v1200, 1
        %v1263 = vsel %vm940, %v1261, %v1262
        %v1264 = vrot.slane %v1201, 1
        %v1265 = vsel %vm940, %v1262, %v1264
        %v1282 = vadd.f32 %v1158, %v1228
        %v1283 = vadd.f32 %v1159, %v1230
        %v1284 = vadd.f32 %v1160, %v1233
        %v1285 = vadd.f32 %v1161, %v1235
        %v1286 = vadd.f32 %v1162, %v1238
        %v1287 = vadd.f32 %v1163, %v1240
        %v1288 = vadd.f32 %v1164, %v1243
        %v1289 = vadd.f32 %v1165, %v1245
        %v1290 = vadd.f32 %v1166, %v1248
        %v1291 = vadd.f32 %v1167, %v1250
        %v1292 = vadd.f32 %v1168, %v1253
        %v1293 = vadd.f32 %v1169, %v1255
        %v1294 = vadd.f32 %v1170, %v1258
        %v1295 = vadd.f32 %v1171, %v1260
        %v1296 = vadd.f32 %v1172, %v1263
        %v1297 = vadd.f32 %v1173, %v1265
        %v1298 = vlaneseq
        %v1299 = vshrl.u32 %v1298, 7
        %v1300 = vsub.s32 5, %v1299
        %v1301 = vrot.slane %v850, %v1300
        %v1302 = vmul.f32 %v823, %v1301
        %v1303 = vmul.f32 %v824, %v1301
        %v1304 = vmul.f32 %v825, %v1301
        %v1305 = vmul.f32 %v826, %v1301
        %v1306 = vmul.f32 %v827, %v1301
        %v1307 = vmul.f32 %v828, %v1301
        %v1308 = vmul.f32 %v829, %v1301
        %v1309 = vmul.f32 %v830, %v1301
        %v1310 = vmul.f32 %v831, %v1301
        %v1311 = vmul.f32 %v832, %v1301
        %v1312 = vmul.f32 %v833, %v1301
        %v1313 = vmul.f32 %v834, %v1301
        %v1314 = vmul.f32 %v835, %v1301
        %v1315 = vmul.f32 %v836, %v1301
        %v1316 = vmul.f32 %v837, %v1301
        %v1317 = vmul.f32 %v838, %v1301
        %v1318 = vmul.f32 %v839, %v1301
        %v1319 = vmul.f32 %v840, %v1301
        %v1320 = vmul.f32 %v841, %v1301
        %v1321 = vmul.f32 %v842, %v1301
        %v1322 = vmul.f32 %v843, %v1301
        %v1323 = vmul.f32 %v844, %v1301
        %v1324 = vmul.f32 %v845, %v1301
        %v1325 = vmul.f32 %v846, %v1301
        %v1350 = vrot.slane %v1302, 2
        %v1351 = vrot.slane %v1303, 2
        %v1352 = vsel %vm1065, %v1350, %v1351
        %v1353 = vrot.slane %v1304, 2
        %v1354 = vsel %vm1065, %v1351, %v1353
        %v1355 = vrot.slane %v1305, 2
        %v1356 = vrot.slane %v1306, 2
        %v1357 = vsel %vm1065, %v1355, %v1356
        %v1358 = vrot.slane %v1307, 2
        %v1359 = vsel %vm1065, %v1356, %v1358
        %v1360 = vrot.slane %v1308, 2
        %v1361 = vrot.slane %v1309, 2
        %v1362 = vsel %vm1065, %v1360, %v1361
        %v1363 = vrot.slane %v1310, 2
        %v1364 = vsel %vm1065, %v1361, %v1363
        %v1365 = vrot.slane %v1311, 2
        %v1366 = vrot.slane %v1312, 2
        %v1367 = vsel %vm1065, %v1365, %v1366
        %v1368 = vrot.slane %v1313, 2
        %v1369 = vsel %vm1065, %v1366, %v1368
        %v1370 = vrot.slane %v1314, 2
        %v1371 = vrot.slane %v1315, 2
        %v1372 = vsel %vm1065, %v1370, %v1371
        %v1373 = vrot.slane %v1316, 2
        %v1374 = vsel %vm1065, %v1371, %v1373
        %v1375 = vrot.slane %v1317, 2
        %v1376 = vrot.slane %v1318, 2
        %v1377 = vsel %vm1065, %v1375, %v1376
        %v1378 = vrot.slane %v1319, 2
        %v1379 = vsel %vm1065, %v1376, %v1378
        %v1380 = vrot.slane %v1320, 2
        %v1381 = vrot.slane %v1321, 2
        %v1382 = vsel %vm1065, %v1380, %v1381
        %v1383 = vrot.slane %v1322, 2
        %v1384 = vsel %vm1065, %v1381, %v1383
        %v1385 = vrot.slane %v1323, 2
        %v1386 = vrot.slane %v1324, 2
        %v1387 = vsel %vm1065, %v1385, %v1386
        %v1388 = vrot.slane %v1325, 2
        %v1389 = vsel %vm1065, %v1386, %v1388
        %v1406 = vadd.f32 %v1282, %v1352
        %v1407 = vadd.f32 %v1283, %v1354
        %v1408 = vadd.f32 %v1284, %v1357
        %v1409 = vadd.f32 %v1285, %v1359
        %v1410 = vadd.f32 %v1286, %v1362
        %v1411 = vadd.f32 %v1287, %v1364
        %v1412 = vadd.f32 %v1288, %v1367
        %v1413 = vadd.f32 %v1289, %v1369
        %v1414 = vadd.f32 %v1290, %v1372
        %v1415 = vadd.f32 %v1291, %v1374
        %v1416 = vadd.f32 %v1292, %v1377
        %v1417 = vadd.f32 %v1293, %v1379
        %v1418 = vadd.f32 %v1294, %v1382
        %v1419 = vadd.f32 %v1295, %v1384
        %v1420 = vadd.f32 %v1296, %v1387
        %v1421 = vadd.f32 %v1297, %v1389
        %v1422 = vlaneseq
        %v1423 = vshrl.u32 %v1422, 7
        %v1424 = vsub.s32 6, %v1423
        %v1425 = vrot.slane %v850, %v1424
        %v1426 = vmul.f32 %v826, %v1425
        %v1427 = vmul.f32 %v827, %v1425
        %v1428 = vmul.f32 %v829, %v1425
        %v1429 = vmul.f32 %v830, %v1425
        %v1430 = vmul.f32 %v832, %v1425
        %v1431 = vmul.f32 %v833, %v1425
        %v1432 = vmul.f32 %v835, %v1425
        %v1433 = vmul.f32 %v836, %v1425
        %v1434 = vmul.f32 %v838, %v1425
        %v1435 = vmul.f32 %v839, %v1425
        %v1436 = vmul.f32 %v841, %v1425
        %v1437 = vmul.f32 %v842, %v1425
        %v1438 = vmul.f32 %v844, %v1425
        %v1439 = vmul.f32 %v845, %v1425
        %v1440 = vmul.f32 %v847, %v1425
        %v1441 = vmul.f32 %v848, %v1425
        %v1442 = vadd.f32 %v1406, %v1426
        %v1443 = vadd.f32 %v1407, %v1427
        %v1444 = vadd.f32 %v1408, %v1428
        %v1445 = vadd.f32 %v1409, %v1429
        %v1446 = vadd.f32 %v1410, %v1430
        %v1447 = vadd.f32 %v1411, %v1431
        %v1448 = vadd.f32 %v1412, %v1432
        %v1449 = vadd.f32 %v1413, %v1433
        %v1450 = vadd.f32 %v1414, %v1434
        %v1451 = vadd.f32 %v1415, %v1435
        %v1452 = vadd.f32 %v1416, %v1436
        %v1453 = vadd.f32 %v1417, %v1437
        %v1454 = vadd.f32 %v1418, %v1438
        %v1455 = vadd.f32 %v1419, %v1439
        %v1456 = vadd.f32 %v1420, %v1440
        %v1457 = vadd.f32 %v1421, %v1441
        %v1458 = vlaneseq
        %v1459 = vshrl.u32 %v1458, 7
        %v1460 = vsub.s32 7, %v1459
        %v1461 = vrot.slane %v850, %v1460
        %v1462 = vmul.f32 %v826, %v1461
        %v1463 = vmul.f32 %v827, %v1461
        %v1464 = vmul.f32 %v828, %v1461
        %v1465 = vmul.f32 %v829, %v1461
        %v1466 = vmul.f32 %v830, %v1461
        %v1467 = vmul.f32 %v831, %v1461
        %v1468 = vmul.f32 %v832, %v1461
        %v1469 = vmul.f32 %v833, %v1461
        %v1470 = vmul.f32 %v834, %v1461
        %v1471 = vmul.f32 %v835, %v1461
        %v1472 = vmul.f32 %v836, %v1461
        %v1473 = vmul.f32 %v837, %v1461
        %v1474 = vmul.f32 %v838, %v1461
        %v1475 = vmul.f32 %v839, %v1461
        %v1476 = vmul.f32 %v840, %v1461
        %v1477 = vmul.f32 %v841, %v1461
        %v1478 = vmul.f32 %v842, %v1461
        %v1479 = vmul.f32 %v843, %v1461
        %v1480 = vmul.f32 %v844, %v1461
        %v1481 = vmul.f32 %v845, %v1461
        %v1482 = vmul.f32 %v846, %v1461
        %v1483 = vmul.f32 %v847, %v1461
        %v1484 = vmul.f32 %v848, %v1461
        %v1485 = vmul.f32 %v849, %v1461
        %v1510 = vrot.slane %v1462, 1
        %v1511 = vrot.slane %v1463, 1
        %v1512 = vsel %vm940, %v1510, %v1511
        %v1513 = vrot.slane %v1464, 1
        %v1514 = vsel %vm940, %v1511, %v1513
        %v1515 = vrot.slane %v1465, 1
        %v1516 = vrot.slane %v1466, 1
        %v1517 = vsel %vm940, %v1515, %v1516
        %v1518 = vrot.slane %v1467, 1
        %v1519 = vsel %vm940, %v1516, %v1518
        %v1520 = vrot.slane %v1468, 1
        %v1521 = vrot.slane %v1469, 1
        %v1522 = vsel %vm940, %v1520, %v1521
        %v1523 = vrot.slane %v1470, 1
        %v1524 = vsel %vm940, %v1521, %v1523
        %v1525 = vrot.slane %v1471, 1
        %v1526 = vrot.slane %v1472, 1
        %v1527 = vsel %vm940, %v1525, %v1526
        %v1528 = vrot.slane %v1473, 1
        %v1529 = vsel %vm940, %v1526, %v1528
        %v1530 = vrot.slane %v1474, 1
        %v1531 = vrot.slane %v1475, 1
        %v1532 = vsel %vm940, %v1530, %v1531
        %v1533 = vrot.slane %v1476, 1
        %v1534 = vsel %vm940, %v1531, %v1533
        %v1535 = vrot.slane %v1477, 1
        %v1536 = vrot.slane %v1478, 1
        %v1537 = vsel %vm940, %v1535, %v1536
        %v1538 = vrot.slane %v1479, 1
        %v1539 = vsel %vm940, %v1536, %v1538
        %v1540 = vrot.slane %v1480, 1
        %v1541 = vrot.slane %v1481, 1
        %v1542 = vsel %vm940, %v1540, %v1541
        %v1543 = vrot.slane %v1482, 1
        %v1544 = vsel %vm940, %v1541, %v1543
        %v1545 = vrot.slane %v1483, 1
        %v1546 = vrot.slane %v1484, 1
        %v1547 = vsel %vm940, %v1545, %v1546
        %v1548 = vrot.slane %v1485, 1
        %v1549 = vsel %vm940, %v1546, %v1548
        %v1566 = vadd.f32 %v1442, %v1512
        %v1567 = vadd.f32 %v1443, %v1514
        %v1568 = vadd.f32 %v1444, %v1517
        %v1569 = vadd.f32 %v1445, %v1519
        %v1570 = vadd.f32 %v1446, %v1522
        %v1571 = vadd.f32 %v1447, %v1524
        %v1572 = vadd.f32 %v1448, %v1527
        %v1573 = vadd.f32 %v1449, %v1529
        %v1574 = vadd.f32 %v1450, %v1532
        %v1575 = vadd.f32 %v1451, %v1534
        %v1576 = vadd.f32 %v1452, %v1537
        %v1577 = vadd.f32 %v1453, %v1539
        %v1578 = vadd.f32 %v1454, %v1542
        %v1579 = vadd.f32 %v1455, %v1544
        %v1580 = vadd.f32 %v1456, %v1547
        %v1581 = vadd.f32 %v1457, %v1549
        %v1582 = vlaneseq
        %v1583 = vshrl.u32 %v1582, 7
        %v1584 = vsub.s32 0, %v1583
        %v1585 = vrot.slane %v851, %v1584
        %v1586 = vmul.f32 %v826, %v1585
        %v1587 = vmul.f32 %v827, %v1585
        %v1588 = vmul.f32 %v828, %v1585
        %v1589 = vmul.f32 %v829, %v1585
        %v1590 = vmul.f32 %v830, %v1585
        %v1591 = vmul.f32 %v831, %v1585
        %v1592 = vmul.f32 %v832, %v1585
        %v1593 = vmul.f32 %v833, %v1585
        %v1594 = vmul.f32 %v834, %v1585
        %v1595 = vmul.f32 %v835, %v1585
        %v1596 = vmul.f32 %v836, %v1585
        %v1597 = vmul.f32 %v837, %v1585
        %v1598 = vmul.f32 %v838, %v1585
        %v1599 = vmul.f32 %v839, %v1585
        %v1600 = vmul.f32 %v840, %v1585
        %v1601 = vmul.f32 %v841, %v1585
        %v1602 = vmul.f32 %v842, %v1585
        %v1603 = vmul.f32 %v843, %v1585
        %v1604 = vmul.f32 %v844, %v1585
        %v1605 = vmul.f32 %v845, %v1585
        %v1606 = vmul.f32 %v846, %v1585
        %v1607 = vmul.f32 %v847, %v1585
        %v1608 = vmul.f32 %v848, %v1585
        %v1609 = vmul.f32 %v849, %v1585
        %v1634 = vrot.slane %v1586, 2
        %v1635 = vrot.slane %v1587, 2
        %v1636 = vsel %vm1065, %v1634, %v1635
        %v1637 = vrot.slane %v1588, 2
        %v1638 = vsel %vm1065, %v1635, %v1637
        %v1639 = vrot.slane %v1589, 2
        %v1640 = vrot.slane %v1590, 2
        %v1641 = vsel %vm1065, %v1639, %v1640
        %v1642 = vrot.slane %v1591, 2
        %v1643 = vsel %vm1065, %v1640, %v1642
        %v1644 = vrot.slane %v1592, 2
        %v1645 = vrot.slane %v1593, 2
        %v1646 = vsel %vm1065, %v1644, %v1645
        %v1647 = vrot.slane %v1594, 2
        %v1648 = vsel %vm1065, %v1645, %v1647
        %v1649 = vrot.slane %v1595, 2
        %v1650 = vrot.slane %v1596, 2
        %v1651 = vsel %vm1065, %v1649, %v1650
        %v1652 = vrot.slane %v1597, 2
        %v1653 = vsel %vm1065, %v1650, %v1652
        %v1654 = vrot.slane %v1598, 2
        %v1655 = vrot.slane %v1599, 2
        %v1656 = vsel %vm1065, %v1654, %v1655
        %v1657 = vrot.slane %v1600, 2
        %v1658 = vsel %vm1065, %v1655, %v1657
        %v1659 = vrot.slane %v1601, 2
        %v1660 = vrot.slane %v1602, 2
        %v1661 = vsel %vm1065, %v1659, %v1660
        %v1662 = vrot.slane %v1603, 2
        %v1663 = vsel %vm1065, %v1660, %v1662
        %v1664 = vrot.slane %v1604, 2
        %v1665 = vrot.slane %v1605, 2
        %v1666 = vsel %vm1065, %v1664, %v1665
        %v1667 = vrot.slane %v1606, 2
        %v1668 = vsel %vm1065, %v1665, %v1667
        %v1669 = vrot.slane %v1607, 2
        %v1670 = vrot.slane %v1608, 2
        %v1671 = vsel %vm1065, %v1669, %v1670
        %v1672 = vrot.slane %v1609, 2
        %v1673 = vsel %vm1065, %v1670, %v1672
        %v1690 = vadd.f32 %v1566, %v1636
        %v1691 = vadd.f32 %v1567, %v1638
        %v1692 = vadd.f32 %v1568, %v1641
        %v1693 = vadd.f32 %v1569, %v1643
        %v1694 = vadd.f32 %v1570, %v1646
        %v1695 = vadd.f32 %v1571, %v1648
        %v1696 = vadd.f32 %v1572, %v1651
        %v1697 = vadd.f32 %v1573, %v1653
        %v1698 = vadd.f32 %v1574, %v1656
        %v1699 = vadd.f32 %v1575, %v1658
        %v1700 = vadd.f32 %v1576, %v1661
        %v1701 = vadd.f32 %v1577, %v1663
        %v1702 = vadd.f32 %v1578, %v1666
        %v1703 = vadd.f32 %v1579, %v1668
        %v1704 = vadd.f32 %v1580, %v1671
        %v1705 = vadd.f32 %v1581, %v1673
        %v1706 = vld [vmem:[%s4] sm:$0x1]
        %v1708 = vlaneseq
        %v1709 = vshrl.u32 %v1708, 7
        %v1710 = vsub.s32 0, %v1709
        %v1711 = vrot.slane %v1706, %v1710
        %v1713 = vadd.f32 %v1690, %v1711
        %v1714 = vadd.f32 %v1691, %v1711
        %v1715 = vadd.f32 %v1692, %v1711
        %v1716 = vadd.f32 %v1693, %v1711
        %v1717 = vadd.f32 %v1694, %v1711
        %v1718 = vadd.f32 %v1695, %v1711
        %v1719 = vadd.f32 %v1696, %v1711
        %v1720 = vadd.f32 %v1697, %v1711
        %v1721 = vadd.f32 %v1698, %v1711
        %v1722 = vadd.f32 %v1699, %v1711
        %v1723 = vadd.f32 %v1700, %v1711
        %v1724 = vadd.f32 %v1701, %v1711
        %v1725 = vadd.f32 %v1702, %v1711
        %v1726 = vadd.f32 %v1703, %v1711
        %v1727 = vadd.f32 %v1704, %v1711
        %v1728 = vadd.f32 %v1705, %v1711
        %v1729 = vmax.f32 %v1713, 0.0
        %v1730 = vmax.f32 %v1714, 0.0
        %v1731 = vmax.f32 %v1715, 0.0
        %v1732 = vmax.f32 %v1716, 0.0
        %v1733 = vmax.f32 %v1717, 0.0
        %v1734 = vmax.f32 %v1718, 0.0
        %v1735 = vmax.f32 %v1719, 0.0
        %v1736 = vmax.f32 %v1720, 0.0
        %v1737 = vmax.f32 %v1721, 0.0
        %v1738 = vmax.f32 %v1722, 0.0
        %v1739 = vmax.f32 %v1723, 0.0
        %v1740 = vmax.f32 %v1724, 0.0
        %v1741 = vmax.f32 %v1725, 0.0
        %v1742 = vmax.f32 %v1726, 0.0
        %v1743 = vmax.f32 %v1727, 0.0
        %v1744 = vmax.f32 %v1728, 0.0
        %v1745 = vmin.f32 %v1729, 6.0
        %v1746 = vmin.f32 %v1730, 6.0
        %v1747 = vmin.f32 %v1731, 6.0
        %v1748 = vmin.f32 %v1732, 6.0
        %v1749 = vmin.f32 %v1733, 6.0
        %v1750 = vmin.f32 %v1734, 6.0
        %v1751 = vmin.f32 %v1735, 6.0
        %v1752 = vmin.f32 %v1736, 6.0
        %v1753 = vmin.f32 %v1737, 6.0
        %v1754 = vmin.f32 %v1738, 6.0
        %v1755 = vmin.f32 %v1739, 6.0
        %v1756 = vmin.f32 %v1740, 6.0
        %v1757 = vmin.f32 %v1741, 6.0
        %v1758 = vmin.f32 %v1742, 6.0
        %v1759 = vmin.f32 %v1743, 6.0
        %v1760 = vmin.f32 %v1744, 6.0
        %v1761 = vpack.c.bf16 %v1746, %v1745
        %v1762 = vpack.c.bf16 %v1748, %v1747
        %v1763 = vpack.c.bf16 %v1750, %v1749
        %v1764 = vpack.c.bf16 %v1752, %v1751
        %v1765 = vpack.c.bf16 %v1754, %v1753
        %v1766 = vpack.c.bf16 %v1756, %v1755
        %v1767 = vpack.c.bf16 %v1758, %v1757
        %v1768 = vpack.c.bf16 %v1760, %v1759
        %v1769 = vld [vmem:[#allocation9] sm:$0xf]
        %v1770 = vld [vmem:[#allocation9 + $0x4] sm:$0xf]
        %v1771 = vld [vmem:[#allocation9 + $0x8] sm:$0xf]
        %v1772 = vld [vmem:[#allocation9 + $0xc] sm:$0xf]
        %v1773 = vld [vmem:[#allocation9 + $0x10] sm:$0xf]
        %v1774 = vld [vmem:[#allocation9 + $0x14] sm:$0xf]
        %v1775 = vld [vmem:[#allocation9 + $0x18] sm:$0xf]
        %v1776 = vld [vmem:[#allocation9 + $0x1c] sm:$0xf]
        %v1777 = vld [vmem:[#allocation9 + $0x20] sm:$0xf]
        %v1778 = vld [vmem:[#allocation9 + $0x24] sm:$0xf]
        %v1779 = vld [vmem:[#allocation9 + $0x28] sm:$0xf]
        %v1780 = vld [vmem:[#allocation9 + $0x2c] sm:$0xf]
        %v1781 = vld [vmem:[#allocation9 + $0x30] sm:$0xf]
        %v1782 = vld [vmem:[#allocation9 + $0x34] sm:$0xf]
        %v1783 = vld [vmem:[#allocation9 + $0x38] sm:$0xf]
        %v1784 = vld [vmem:[#allocation9 + $0x3c] sm:$0xf]
        %v1785 = vld [vmem:[%s6] sm:$0x1]
        %v1787 = vlaneseq
        %v1788 = vshrl.u32 %v1787, 7
        %v1789 = vsub.s32 0, %v1788
        %v1790 = vrot.slane %v1785, %v1789
        %v1808 = vunpack.c.l.b16 %v1769
        %v1809 = vunpack.c.l.b16 %v1770
        %v1810 = vunpack.c.l.b16 %v1771
        %v1811 = vunpack.c.l.b16 %v1772
        %v1812 = vunpack.c.l.b16 %v1773
        %v1813 = vunpack.c.l.b16 %v1774
        %v1814 = vunpack.c.l.b16 %v1775
        %v1815 = vunpack.c.l.b16 %v1776
        %v1816 = vunpack.c.l.b16 %v1777
        %v1817 = vunpack.c.l.b16 %v1778
        %v1818 = vunpack.c.l.b16 %v1779
        %v1819 = vunpack.c.l.b16 %v1780
        %v1820 = vunpack.c.l.b16 %v1781
        %v1821 = vunpack.c.l.b16 %v1782
        %v1822 = vunpack.c.l.b16 %v1783
        %v1823 = vunpack.c.l.b16 %v1784
        %v1824 = vpack.c.b16 %v1809, %v1808
        %v1825 = vpack.c.b16 %v1811, %v1810
        %v1826 = vpack.c.b16 %v1813, %v1812
        %v1827 = vpack.c.b16 %v1815, %v1814
        %v1828 = vpack.c.b16 %v1817, %v1816
        %v1829 = vpack.c.b16 %v1819, %v1818
        %v1830 = vpack.c.b16 %v1821, %v1820
        %v1831 = vpack.c.b16 %v1823, %v1822
        %1840 = vmatprep.subr.bf16.mxu0 0
        %1841 = vmatpush1.bf16.msra.mxu0 %v1831
        %1842 = vmatprep.subr.bf16.mxu0 0
        %1843 = vmatpush1.bf16.msra.mxu0 %v1830
        %1844 = vmatprep.subr.bf16.mxu0 0
        %1845 = vmatpush1.bf16.msra.mxu0 %v1829
        %1846 = vmatprep.subr.bf16.mxu0 0
        %1847 = vmatpush1.bf16.msra.mxu0 %v1828
        %1848 = vmatprep.subr.bf16.mxu0 0
        %1849 = vmatpush1.bf16.msra.mxu0 %v1827
        %1850 = vmatprep.subr.bf16.mxu0 0
        %1851 = vmatpush1.bf16.msra.mxu0 %v1826
        %1852 = vmatprep.subr.bf16.mxu0 0
        %1853 = vmatpush1.bf16.msra.mxu0 %v1825
        %1854 = vmatprep.subr.bf16.mxu0 0
        %1855 = vmatpush1.bf16.msra.mxu0 %v1824
        %1856 = vmatprep.subr.bf16.mxu0 0
        %1857 = vmatpush2.bf16.msra.mxu0 0
        %1858 = vmatprep.subr.bf16.mxu0 0
        %1859 = vmatpush2.bf16.msra.mxu0 0
        %1860 = vmatprep.subr.bf16.mxu0 0
        %1861 = vmatpush2.bf16.msra.mxu0 0
        %1862 = vmatprep.subr.bf16.mxu0 0
        %1863 = vmatpush2.bf16.msra.mxu0 0
        %1864 = vmatprep.subr.bf16.mxu0 0
        %1865 = vmatpush2.bf16.msra.mxu0 0
        %1866 = vmatprep.subr.bf16.mxu0 0
        %1867 = vmatpush2.bf16.msra.mxu0 0
        %1868 = vmatprep.subr.bf16.mxu0 0
        %1869 = vmatpush2.bf16.msra.mxu0 0
        %1870 = vmatprep.subr.bf16.mxu0 0
        %1871 = vmatpush2.bf16.msra.mxu0 0
        %1872 = vmatprep.mubr.bf16.mxu0 0
        %1873 = vmatmul.mubr.bf16.gmra.mxu0 %v1761
        %v1874 = vpop.f32.mrf.mxu0
        %v1875 = vadd.f32 %v1790, %v1874
        %v1876 = vpop.f32.mrf.mxu0
        %v1877 = vpop.f32.mrf.mxu0
        %v1878 = vadd.f32 %v1790, %v1877
        %v1879 = vpop.f32.mrf.mxu0
        %1880 = vmatprep.mubr.bf16.mxu0 0
        %1881 = vmatmul.mubr.bf16.gmra.mxu0 %v1762
        %v1882 = vpop.f32.mrf.mxu0
        %v1883 = vadd.f32 %v1790, %v1882
        %v1884 = vpop.f32.mrf.mxu0
        %v1885 = vpop.f32.mrf.mxu0
        %v1886 = vadd.f32 %v1790, %v1885
        %v1887 = vpop.f32.mrf.mxu0
        %1888 = vmatprep.mubr.bf16.mxu0 0
        %1889 = vmatmul.mubr.bf16.gmra.mxu0 %v1763
        %v1890 = vpop.f32.mrf.mxu0
        %v1891 = vadd.f32 %v1790, %v1890
        %v1892 = vpop.f32.mrf.mxu0
        %v1893 = vpop.f32.mrf.mxu0
        %v1894 = vadd.f32 %v1790, %v1893
        %v1895 = vpop.f32.mrf.mxu0
        %1896 = vmatprep.mubr.bf16.mxu0 0
        %1897 = vmatmul.mubr.bf16.gmra.mxu0 %v1764
        %v1898 = vpop.f32.mrf.mxu0
        %v1899 = vadd.f32 %v1790, %v1898
        %v1900 = vpop.f32.mrf.mxu0
        %v1901 = vpop.f32.mrf.mxu0
        %v1902 = vadd.f32 %v1790, %v1901
        %v1903 = vpop.f32.mrf.mxu0
        %1904 = vmatprep.mubr.bf16.mxu0 0
        %1905 = vmatmul.mubr.bf16.gmra.mxu0 %v1765
        %v1906 = vpop.f32.mrf.mxu0
        %v1907 = vadd.f32 %v1790, %v1906
        %v1908 = vpop.f32.mrf.mxu0
        %v1909 = vpop.f32.mrf.mxu0
        %v1910 = vadd.f32 %v1790, %v1909
        %v1911 = vpop.f32.mrf.mxu0
        %1912 = vmatprep.mubr.bf16.mxu0 0
        %1913 = vmatmul.mubr.bf16.gmra.mxu0 %v1766
        %v1914 = vpop.f32.mrf.mxu0
        %v1915 = vadd.f32 %v1790, %v1914
        %v1916 = vpop.f32.mrf.mxu0
        %v1917 = vpop.f32.mrf.mxu0
        %v1918 = vadd.f32 %v1790, %v1917
        %v1919 = vpop.f32.mrf.mxu0
        %1920 = vmatprep.mubr.bf16.mxu0 0
        %1921 = vmatmul.mubr.bf16.gmra.mxu0 %v1767
        %v1922 = vpop.f32.mrf.mxu0
        %v1923 = vadd.f32 %v1790, %v1922
        %v1924 = vpop.f32.mrf.mxu0
        %v1925 = vpop.f32.mrf.mxu0
        %v1926 = vadd.f32 %v1790, %v1925
        %v1927 = vpop.f32.mrf.mxu0
        %1928 = vmatprep.mubr.bf16.mxu0 0
        %1929 = vmatmul.mubr.bf16.gmra.mxu0 %v1768
        %v1930 = vpop.f32.mrf.mxu0
        %v1931 = vadd.f32 %v1790, %v1930
        %v1932 = vpop.f32.mrf.mxu0
        %v1933 = vpop.f32.mrf.mxu0
        %v1934 = vadd.f32 %v1790, %v1933
        %v1935 = vpop.f32.mrf.mxu0
        %1936 = vdwg.mxu0
        %v1961 = vrot.slane %v384, 1
        %v1962 = vrot.slane %v385, 1
        %v1963 = vsel %vm940, %v1961, %v1962
        %v1964 = vrot.slane %v386, 1
        %v1965 = vsel %vm940, %v1962, %v1964
        %v1966 = vrot.slane %v387, 1
        %v1967 = vrot.slane %v388, 1
        %v1968 = vsel %vm940, %v1966, %v1967
        %v1969 = vrot.slane %v389, 1
        %v1970 = vsel %vm940, %v1967, %v1969
        %v1971 = vrot.slane %v390, 1
        %v1972 = vrot.slane %v391, 1
        %v1973 = vsel %vm940, %v1971, %v1972
        %v1974 = vrot.slane %v392, 1
        %v1975 = vsel %vm940, %v1972, %v1974
        %v1976 = vrot.slane %v393, 1
        %v1977 = vrot.slane %v394, 1
        %v1978 = vsel %vm940, %v1976, %v1977
        %v1979 = vrot.slane %v395, 1
        %v1980 = vsel %vm940, %v1977, %v1979
        %v1981 = vrot.slane %v396, 1
        %v1982 = vrot.slane %v397, 1
        %v1983 = vsel %vm940, %v1981, %v1982
        %v1984 = vrot.slane %v398, 1
        %v1985 = vsel %vm940, %v1982, %v1984
        %v1986 = vrot.slane %v399, 1
        %v1987 = vrot.slane %v400, 1
        %v1988 = vsel %vm940, %v1986, %v1987
        %v1989 = vrot.slane %v401, 1
        %v1990 = vsel %vm940, %v1987, %v1989
        %v1991 = vrot.slane %v402, 1
        %v1992 = vrot.slane %v403, 1
        %v1993 = vsel %vm940, %v1991, %v1992
        %v1994 = vrot.slane %v404, 1
        %v1995 = vsel %vm940, %v1992, %v1994
        %v1996 = vrot.slane %v405, 1
        %v1997 = vrot.slane %v406, 1
        %v1998 = vsel %vm940, %v1996, %v1997
        %v1999 = vrot.slane %v407, 1
        %v2000 = vsel %vm940, %v1997, %v1999
        %v2017 = vpack.c.bf16 %v1965, %v1963
        %v2018 = vpack.c.bf16 %v1970, %v1968
        %v2019 = vpack.c.bf16 %v1975, %v1973
        %v2020 = vpack.c.bf16 %v1980, %v1978
        %v2021 = vpack.c.bf16 %v1985, %v1983
        %v2022 = vpack.c.bf16 %v1990, %v1988
        %v2023 = vpack.c.bf16 %v1995, %v1993
        %v2024 = vpack.c.bf16 %v2000, %v1998
        %v2025 = vld [vmem:[#allocation10] sm:$0xf]
        %v2026 = vld [vmem:[#allocation10 + $0x4] sm:$0xf]
        %v2027 = vld [vmem:[#allocation10 + $0x8] sm:$0xf]
        %v2028 = vld [vmem:[#allocation10 + $0xc] sm:$0xf]
        %v2029 = vld [vmem:[#allocation10 + $0x10] sm:$0xf]
        %v2030 = vld [vmem:[#allocation10 + $0x14] sm:$0xf]
        %v2031 = vld [vmem:[#allocation10 + $0x18] sm:$0xf]
        %v2032 = vld [vmem:[#allocation10 + $0x1c] sm:$0xf]
        %v2033 = vld [vmem:[#allocation10 + $0x20] sm:$0xf]
        %v2034 = vld [vmem:[#allocation10 + $0x24] sm:$0xf]
        %v2035 = vld [vmem:[#allocation10 + $0x28] sm:$0xf]
        %v2036 = vld [vmem:[#allocation10 + $0x2c] sm:$0xf]
        %v2037 = vld [vmem:[#allocation10 + $0x30] sm:$0xf]
        %v2038 = vld [vmem:[#allocation10 + $0x34] sm:$0xf]
        %v2039 = vld [vmem:[#allocation10 + $0x38] sm:$0xf]
        %v2040 = vld [vmem:[#allocation10 + $0x3c] sm:$0xf]
        %v2057 = vunpack.c.l.b16 %v2025
        %v2058 = vunpack.c.l.b16 %v2026
        %v2059 = vunpack.c.l.b16 %v2027
        %v2060 = vunpack.c.l.b16 %v2028
        %v2061 = vunpack.c.l.b16 %v2029
        %v2062 = vunpack.c.l.b16 %v2030
        %v2063 = vunpack.c.l.b16 %v2031
        %v2064 = vunpack.c.l.b16 %v2032
        %v2065 = vunpack.c.l.b16 %v2033
        %v2066 = vunpack.c.l.b16 %v2034
        %v2067 = vunpack.c.l.b16 %v2035
        %v2068 = vunpack.c.l.b16 %v2036
        %v2069 = vunpack.c.l.b16 %v2037
        %v2070 = vunpack.c.l.b16 %v2038
        %v2071 = vunpack.c.l.b16 %v2039
        %v2072 = vunpack.c.l.b16 %v2040
        %v2073 = vpack.c.b16 %v2058, %v2057
        %v2074 = vpack.c.b16 %v2060, %v2059
        %v2075 = vpack.c.b16 %v2062, %v2061
        %v2076 = vpack.c.b16 %v2064, %v2063
        %v2077 = vpack.c.b16 %v2066, %v2065
        %v2078 = vpack.c.b16 %v2068, %v2067
        %v2079 = vpack.c.b16 %v2070, %v2069
        %v2080 = vpack.c.b16 %v2072, %v2071
        %2089 = vmatprep.subr.bf16.mxu0 0
        %2090 = vmatpush1.bf16.msra.mxu0 %v2080
        %2091 = vmatprep.subr.bf16.mxu0 0
        %2092 = vmatpush1.bf16.msra.mxu0 %v2079
        %2093 = vmatprep.subr.bf16.mxu0 0
        %2094 = vmatpush1.bf16.msra.mxu0 %v2078
        %2095 = vmatprep.subr.bf16.mxu0 0
        %2096 = vmatpush1.bf16.msra.mxu0 %v2077
        %2097 = vmatprep.subr.bf16.mxu0 0
        %2098 = vmatpush1.bf16.msra.mxu0 %v2076
        %2099 = vmatprep.subr.bf16.mxu0 0
        %2100 = vmatpush1.bf16.msra.mxu0 %v2075
        %2101 = vmatprep.subr.bf16.mxu0 0
        %2102 = vmatpush1.bf16.msra.mxu0 %v2074
        %2103 = vmatprep.subr.bf16.mxu0 0
        %2104 = vmatpush1.bf16.msra.mxu0 %v2073
        %2105 = vmatprep.subr.bf16.mxu0 0
        %2106 = vmatpush2.bf16.msra.mxu0 0
        %2107 = vmatprep.subr.bf16.mxu0 0
        %2108 = vmatpush2.bf16.msra.mxu0 0
        %2109 = vmatprep.subr.bf16.mxu0 0
        %2110 = vmatpush2.bf16.msra.mxu0 0
        %2111 = vmatprep.subr.bf16.mxu0 0
        %2112 = vmatpush2.bf16.msra.mxu0 0
        %2113 = vmatprep.subr.bf16.mxu0 0
        %2114 = vmatpush2.bf16.msra.mxu0 0
        %2115 = vmatprep.subr.bf16.mxu0 0
        %2116 = vmatpush2.bf16.msra.mxu0 0
        %2117 = vmatprep.subr.bf16.mxu0 0
        %2118 = vmatpush2.bf16.msra.mxu0 0
        %2119 = vmatprep.subr.bf16.mxu0 0
        %2120 = vmatpush2.bf16.msra.mxu0 0
        %2121 = vmatprep.mubr.bf16.mxu0 0
        %2122 = vmatmul.mubr.bf16.gmra.mxu0 %v2017
        %v2123 = vpop.f32.mrf.mxu0
        %v2124 = vadd.f32 0.0, %v2123
        %v2125 = vpop.f32.mrf.mxu0
        %v2126 = vpop.f32.mrf.mxu0
        %v2127 = vadd.f32 0.0, %v2126
        %v2128 = vpop.f32.mrf.mxu0
        %2129 = vmatprep.mubr.bf16.mxu0 0
        %2130 = vmatmul.mubr.bf16.gmra.mxu0 %v2018
        %v2131 = vpop.f32.mrf.mxu0
        %v2132 = vadd.f32 0.0, %v2131
        %v2133 = vpop.f32.mrf.mxu0
        %v2134 = vpop.f32.mrf.mxu0
        %v2135 = vadd.f32 0.0, %v2134
        %v2136 = vpop.f32.mrf.mxu0
        %2137 = vmatprep.mubr.bf16.mxu0 0
        %2138 = vmatmul.mubr.bf16.gmra.mxu0 %v2019
        %v2139 = vpop.f32.mrf.mxu0
        %v2140 = vadd.f32 0.0, %v2139
        %v2141 = vpop.f32.mrf.mxu0
        %v2142 = vpop.f32.mrf.mxu0
        %v2143 = vadd.f32 0.0, %v2142
        %v2144 = vpop.f32.mrf.mxu0
        %2145 = vmatprep.mubr.bf16.mxu0 0
        %2146 = vmatmul.mubr.bf16.gmra.mxu0 %v2020
        %v2147 = vpop.f32.mrf.mxu0
        %v2148 = vadd.f32 0.0, %v2147
        %v2149 = vpop.f32.mrf.mxu0
        %v2150 = vpop.f32.mrf.mxu0
        %v2151 = vadd.f32 0.0, %v2150
        %v2152 = vpop.f32.mrf.mxu0
        %2153 = vmatprep.mubr.bf16.mxu0 0
        %2154 = vmatmul.mubr.bf16.gmra.mxu0 %v2021
        %v2155 = vpop.f32.mrf.mxu0
        %v2156 = vadd.f32 0.0, %v2155
        %v2157 = vpop.f32.mrf.mxu0
        %v2158 = vpop.f32.mrf.mxu0
        %v2159 = vadd.f32 0.0, %v2158
        %v2160 = vpop.f32.mrf.mxu0
        %2161 = vmatprep.mubr.bf16.mxu0 0
        %2162 = vmatmul.mubr.bf16.gmra.mxu0 %v2022
        %v2163 = vpop.f32.mrf.mxu0
        %v2164 = vadd.f32 0.0, %v2163
        %v2165 = vpop.f32.mrf.mxu0
        %v2166 = vpop.f32.mrf.mxu0
        %v2167 = vadd.f32 0.0, %v2166
        %v2168 = vpop.f32.mrf.mxu0
        %2169 = vmatprep.mubr.bf16.mxu0 0
        %2170 = vmatmul.mubr.bf16.gmra.mxu0 %v2023
        %v2171 = vpop.f32.mrf.mxu0
        %v2172 = vadd.f32 0.0, %v2171
        %v2173 = vpop.f32.mrf.mxu0
        %v2174 = vpop.f32.mrf.mxu0
        %v2175 = vadd.f32 0.0, %v2174
        %v2176 = vpop.f32.mrf.mxu0
        %2177 = vmatprep.mubr.bf16.mxu0 0
        %2178 = vmatmul.mubr.bf16.gmra.mxu0 %v2024
        %v2179 = vpop.f32.mrf.mxu0
        %v2180 = vadd.f32 0.0, %v2179
        %v2181 = vpop.f32.mrf.mxu0
        %v2182 = vpop.f32.mrf.mxu0
        %v2183 = vadd.f32 0.0, %v2182
        %v2184 = vpop.f32.mrf.mxu0
        %2185 = vdwg.mxu0
        %v2186 = vadd.f32 %v1875, %v2124
        %v2187 = vadd.f32 %v1878, %v2127
        %v2188 = vadd.f32 %v1883, %v2132
        %v2189 = vadd.f32 %v1886, %v2135
        %v2190 = vadd.f32 %v1891, %v2140
        %v2191 = vadd.f32 %v1894, %v2143
        %v2192 = vadd.f32 %v1899, %v2148
        %v2193 = vadd.f32 %v1902, %v2151
        %v2194 = vadd.f32 %v1907, %v2156
        %v2195 = vadd.f32 %v1910, %v2159
        %v2196 = vadd.f32 %v1915, %v2164
        %v2197 = vadd.f32 %v1918, %v2167
        %v2198 = vadd.f32 %v1923, %v2172
        %v2199 = vadd.f32 %v1926, %v2175
        %v2200 = vadd.f32 %v1931, %v2180
        %v2201 = vadd.f32 %v1934, %v2183
        %v2202 = vld [vmem:[%s8] sm:$0x1]
        %v2204 = vlaneseq
        %v2205 = vshrl.u32 %v2204, 7
        %v2206 = vsub.s32 0, %v2205
        %v2207 = vrot.slane %v2202, %v2206
        %v2209 = vadd.f32 %v2186, %v2207
        %v2210 = vadd.f32 %v2187, %v2207
        %v2211 = vadd.f32 %v2188, %v2207
        %v2212 = vadd.f32 %v2189, %v2207
        %v2213 = vadd.f32 %v2190, %v2207
        %v2214 = vadd.f32 %v2191, %v2207
        %v2215 = vadd.f32 %v2192, %v2207
        %v2216 = vadd.f32 %v2193, %v2207
        %v2217 = vadd.f32 %v2194, %v2207
        %v2218 = vadd.f32 %v2195, %v2207
        %v2219 = vadd.f32 %v2196, %v2207
        %v2220 = vadd.f32 %v2197, %v2207
        %v2221 = vadd.f32 %v2198, %v2207
        %v2222 = vadd.f32 %v2199, %v2207
        %v2223 = vadd.f32 %v2200, %v2207
        %v2224 = vadd.f32 %v2201, %v2207
        %2225 = vst [vmem:[%s357] sm:$0xff] %v2209
        %2226 = vst [vmem:[%s357 + $0x8] sm:$0xff] %v2210
        %2227 = vst [vmem:[%s357 + $0x10] sm:$0xff] %v2211
        %2228 = vst [vmem:[%s357 + $0x18] sm:$0xff] %v2212
        %2229 = vst [vmem:[%s357 + $0x20] sm:$0xff] %v2213
        %2230 = vst [vmem:[%s357 + $0x28] sm:$0xff] %v2214
        %2231 = vst [vmem:[%s357 + $0x30] sm:$0xff] %v2215
        %2232 = vst [vmem:[%s357 + $0x38] sm:$0xff] %v2216
        %2233 = vst [vmem:[%s357 + $0x40] sm:$0xff] %v2217
        %2234 = vst [vmem:[%s357 + $0x48] sm:$0xff] %v2218
        %2235 = vst [vmem:[%s357 + $0x50] sm:$0xff] %v2219
        %2236 = vst [vmem:[%s357 + $0x58] sm:$0xff] %v2220
        %2237 = vst [vmem:[%s357 + $0x60] sm:$0xff] %v2221
        %2238 = vst [vmem:[%s357 + $0x68] sm:$0xff] %v2222
        %2239 = vst [vmem:[%s357 + $0x70] sm:$0xff] %v2223
        %2240 = vst [vmem:[%s357 + $0x78] sm:$0xff] %v2224
        %s2241 = sand.u32 %s216, 1
        %s2242 = scalar_lea.sflag [#allocation6], %s2241
        %s2243 = sand.u32 %s216, 1
        %s2244 = smul.addr %s2243, 128
        %s2245 = scalar_lea.vmem [#allocation12], %s2244
        // Predicated region
        $region73: #{tpu_custom_call.1} parent=51 // pred_check
          %p2246 = pneg %p226
        $region74: #{tpu_custom_call.1} parent=51 // pred_check_branch
          %2248 = sbr.rel (%p2246) target = $region76
        $region75: #{tpu_custom_call.1} parent=51 // pred_region
          %s2249 = smul.u32 8, %s31
          %s2251 = ssub.s32 2048, 2048
          %2252 = vsyncadd %s2242, %s2251
          %s2253 = smul.addr %s2249, 2
          %s2254 = smul.addr %s30, 32
          %s2255 = sadd.s32 %s2253, %s2254
          %s2256 = smul.addr %s2255, 128
          %s2257 = scalar_lea.hbm %s9, %s2256
          %s2258 = sshll.u32 %s2245, 4
          %s2259 = int_to_ptr.vmem [resolvable:$true] %s2258
          %2264 = dma.vmem_to_hbm [thread:$0]  %s2259, 2048, %s2257, %s2242, 128, 128, 8
        $region76: #{tpu_custom_call.1} parent=51 // pred_fallthru
          _
      $region52: #{tpu_custom_call.1} parent=5 // pred_fallthru
        _
      %p2265 = scmp.le.s32.totalorder 2, %s21
      // Predicated region
      $region77: #{tpu_custom_call.1} parent=5 // pred_check
        %p2266 = pneg %p2265
      $region78: #{tpu_custom_call.1} parent=5 // pred_check_branch
        %2268 = sbr.rel (%p2266) target = $region80
      $region79: #{tpu_custom_call.1} parent=5 // pred_region
        %s2269 = ssub.s32 %s21, 2
        // Predicated region
        $region81: #{tpu_custom_call.1} parent=79 // pred_check
          %p2270 = pneg %p232
        $region82: #{tpu_custom_call.1} parent=79 // pred_check_branch
          %2272 = sbr.rel (%p2270) target = $region84
        $region83: #{tpu_custom_call.1} parent=79 // pred_region
          %s2273 = sand.u32 %s217, 1
          %s2274 = scalar_lea.sflag [#allocation6], %s2273
          %s2275 = sand.u32 %s217, 1
          %s2276 = smul.addr %s2275, 128
          %s2277 = scalar_lea.vmem [#allocation12], %s2276
          %2278 = dma.done %s2274, 2048
        $region84: #{tpu_custom_call.1} parent=79 // pred_fallthru
          _
      $region80: #{tpu_custom_call.1} parent=5 // pred_fallthru
        _
    $region6: #{tpu_custom_call.1} parent=1 // loop_footer
      %s25 = sadd.s32 1, %s21
    $region7: #{tpu_custom_call.1} parent=1 // loop_footer_branch
      %20 = sbr.rel target = $region3
    $region8: #{tpu_custom_call.1} parent=1 // loop_exit
      _
    %2279 = vsyncpa [#allocation5], 1
    %s2280 = scalar_lea.sflag [#allocation5], 1
    %2281 = vsyncpa %s2280, 1
    %2282 = vsyncpa [#allocation8], 1
    %2283 = vsyncpa [#allocation11], 1
    %2284 = vsyncpa [#allocation6], 1
    %s2285 = scalar_lea.sflag [#allocation6], 1
    %2286 = vsyncpa %s2285, 1
  %2287 = vsyncmov [#allocation3]
  %s2288 = vpop.sfrf %2287
  %p2289 = scmp.eq.s32.totalorder %s2288, 0
  %p2290 = pneg %p2289
  %2292 = shalt.err (%p2290)

</llo_original>
